<compile_context>
chip_gen: v7x
topology: tpu7x:2x2x1
jax: 0.10.0
libtpu: 0.0.40
codegen_flags: <defaults>
</compile_context>

<pallas_src>
import functools
import numpy as np
import jax
import jax.numpy as jnp
from jax.experimental import pallas as pl
from jax.experimental.pallas import tpu as pltpu


def _cdiv(a, b):
    return -(-a // b)


def _round_up(v, m):
    return _cdiv(v, m) * m


def _fc_kernel(*refs, compute_dtype, weight_gain, bias_gain, activation,
               act_gain, has_bias, single_k, out_is_acc):
    """One (tm, tn) output tile; grid = (rows, cols, k-reduction).

    refs = (x_ref, w_ref, [b_ref], o_ref, [acc_ref])
    """
    idx = 0
    x_ref = refs[idx]; idx += 1
    w_ref = refs[idx]; idx += 1
    b_ref = None
    if has_bias:
        b_ref = refs[idx]; idx += 1
    o_ref = refs[idx]; idx += 1
    if single_k or out_is_acc:
        acc_ref = o_ref
    else:
        acc_ref = refs[idx]

    def epilogue(y):
        # Scalar weight_gain folded into the f32 epilogue (bf16-safe, math-identical).
        y = y * jnp.float32(weight_gain)
        if has_bias:
            b = b_ref[...].astype(jnp.float32)
            if bias_gain != 1:
                b = b * jnp.float32(bias_gain)
            y = y + b                      # (1, tn) broadcasts over rows
        if activation == 'linear':
            pass
        elif activation == 'lrelu':
            y = jnp.where(y >= 0, y, 0.2 * y) * jnp.float32(act_gain)
        elif activation == 'relu':
            y = jnp.maximum(y, 0.0) * jnp.float32(act_gain)
        else:
            raise NotImplementedError(activation)
        return y.astype(o_ref.dtype)

    # Cast the x tile to the MXU compute dtype in-kernel (VPU work, overlapped),
    # so no separate wrapper-side cast pass over x is needed.
    part = jnp.dot(x_ref[...].astype(compute_dtype), w_ref[...],
                   preferred_element_type=jnp.float32)

    if single_k:
        # Common (weight-resident) case: one dot, fused epilogue, no accumulator.
        o_ref[...] = epilogue(part)
    else:
        k = pl.program_id(2)

        @pl.when(k == 0)
        def _():
            acc_ref[...] = jnp.zeros_like(acc_ref)

        acc_ref[...] += part

        @pl.when(k == pl.num_programs(2) - 1)
        def _():
            o_ref[...] = epilogue(acc_ref[...].astype(jnp.float32))


class FullyConnectedLayer:
    """JAX/Pallas port of the PyTorch FullyConnectedLayer."""

    def __init__(self, in_features, out_features, bias=True, activation='linear',
                 lr_multiplier=1, bias_init=0, *, key=None):
        if activation not in ('linear', 'lrelu', 'relu'):
            # TODO(synk): other bias_act activations (sigmoid/tanh/...) not wired up.
            raise NotImplementedError(activation)
        self.in_features = int(in_features)
        self.out_features = int(out_features)
        self.activation = activation
        self.weight_gain = float(lr_multiplier / np.sqrt(in_features))
        self.bias_gain = float(lr_multiplier)
        # bias_act default gains: linear -> 1, lrelu/relu -> sqrt(2)
        self.act_gain = 1.0 if activation == 'linear' else float(np.sqrt(2.0))
        if key is None:
            key = jax.random.PRNGKey(0)
        self.weight = (jax.random.normal(key, (out_features, in_features),
                                         dtype=jnp.float32) / lr_multiplier)
        self.bias = (jnp.full((out_features,), np.float32(bias_init),
                              dtype=jnp.float32) if bias else None)

        # Tunables (per perf review; instance attrs so tests / users can override).
        self.pallas_min_work = 1 << 22        # MACs; below this XLA's fused addmm wins.
        self.weight_resident_bytes = 12 << 20 # double-buffered weight cap for residency.
        self.vmem_tile_budget = 20 << 20      # target working set; safe on v5e/v6e/v7x.
        self.max_tk = 2048                    # K-tile cap on the streaming path.

        # Per-(dtype, padded-shape) caches of the transposed weight / padded bias.
        self._wt_cache = {}
        self._bias_cache = {}

    # -- cached, padded parameters -------------------------------------------
    def _padded_wt(self, compute_dtype, Kp, Mp):
        key = (jnp.dtype(compute_dtype).name, Kp, Mp)
        wt = self._wt_cache.get(key)
        if wt is None:
            wt = jnp.transpose(self.weight).astype(compute_dtype)   # [K, M]
            K, M = self.in_features, self.out_features
            if (Kp, Mp) != (K, M):
                wt = jnp.pad(wt, ((0, Kp - K), (0, Mp - M)))
            self._wt_cache[key] = wt
        return wt

    def _padded_bias(self, Mp):
        b = self._bias_cache.get(Mp)
        if b is None:
            M = self.out_features
            b = self.bias.astype(jnp.float32).reshape(1, M)
            if Mp != M:
                b = jnp.pad(b, ((0, 0), (0, Mp - M)))
            self._bias_cache[Mp] = b
        return b

    # -- tiny-problem fallback -------------------------------------------------
    def _jnp_forward(self, x):
        w = self.weight.astype(x.dtype) * self.weight_gain
        y = jnp.dot(x, w.T, precision=jax.lax.Precision.HIGHEST)
        if self.bias is not None:
            b = self.bias.astype(x.dtype)
            if self.bias_gain != 1:
                b = b * self.bias_gain
            y = y + b[None, :]
        if self.activation == 'lrelu':
            y = jnp.where(y >= 0, y, 0.2 * y) * self.act_gain
        elif self.activation == 'relu':
            y = jnp.maximum(y, 0.0) * self.act_gain
        return y

    # -- forward ----------------------------------------------------------------
    def __call__(self, x, *, compute_dtype=None):
        N, K = x.shape
        M = self.out_features
        assert K == self.in_features
        out_dtype = x.dtype

        if N * K * M < self.pallas_min_work:
            return self._jnp_forward(x)

        # bf16 MXU path by default for f32 inputs (f32 accumulation + f32 epilogue);
        # pass compute_dtype=jnp.float32 for full-precision matmul.
        if compute_dtype is None:
            compute_dtype = (jnp.bfloat16 if jnp.dtype(out_dtype) == jnp.float32
                             else out_dtype)
        compute_dtype = jnp.dtype(compute_dtype)

        has_bias = self.bias is not None
        out_is_f32 = jnp.dtype(out_dtype) == jnp.float32
        w_item = compute_dtype.itemsize
        x_item = jnp.dtype(x.dtype).itemsize
        out_item = jnp.dtype(out_dtype).itemsize

        Mp = _round_up(M, 128)

        # ---- tile selection: padding-minimizing, weight-resident when it fits ----
        resident = 2 * K * Mp * w_item <= self.weight_resident_bytes
        if resident:
            tk, Kp = K, K       # full-K block: no K padding, k-grid collapses to 1
            tn = Mp             # full output width: weight block index is constant
        else:
            if Mp <= 512:
                tn = Mp
            else:
                tn = next(t for t in (512, 384, 256, 128) if Mp % t == 0)
            Kp128 = _round_up(K, 128)
            nk = _cdiv(Kp128, min(self.max_tk, Kp128))
            tk = _round_up(_cdiv(Kp128, nk), 128)
            Kp = tk * nk
        grid_j = Mp // tn
        grid_k = Kp // tk

        need_acc_scratch = (grid_k > 1) and (not out_is_f32)
        fixed = 2 * tk * tn * w_item + (2 * tn * 4 if has_bias else 0)
        per_row = (2 * tk * x_item + 2 * tn * out_item
                   + (tn * 4 if need_acc_scratch else 0))
        tm_cap = max(8, min(512, (self.vmem_tile_budget - fixed) // per_row // 8 * 8))
        tm = _round_up(_cdiv(N, _cdiv(N, tm_cap)), 8)   # balanced row tiling

        # Megacore: v7x has 2 TensorCores -> ensure the parallel (i,j) grid >= 2.
        if _cdiv(N, tm) * grid_j < 2:
            if N > 8:
                tm = _round_up(_cdiv(N, 2), 8)
            elif tn >= 256 and tn % 256 == 0:
                tn = tn // 2
                grid_j = Mp // tn
        Np = _round_up(N, tm)
        grid_i = Np // tm

        # ---- operands: avoid wrapper HBM passes whenever shapes already align ----
        x_in = x
        if (Np, Kp) != (N, K):
            # Rare path; cast first so the padded copy is in the narrow compute dtype.
            x_in = jnp.pad(x.astype(compute_dtype), ((0, Np - N), (0, Kp - K)))
        wt = self._padded_wt(compute_dtype, Kp, Mp)        # [Kp, Mp], cached

        inputs = [x_in, wt]
        in_specs = [
            pl.BlockSpec((tm, tk), lambda i, j, k: (i, k)),   # x tile
            pl.BlockSpec((tk, tn), lambda i, j, k: (k, j)),   # w.T tile (resident when
        ]                                                     #  grid_j == grid_k == 1)
        if has_bias:
            inputs.append(self._padded_bias(Mp))              # [1, Mp] f32, cached
            in_specs.append(pl.BlockSpec((1, tn), lambda i, j, k: (0, j)))

        x_pass_item = jnp.dtype(x_in.dtype).itemsize
        single_k = grid_k == 1
        scratch_shapes = ([pltpu.VMEM((tm, tn), jnp.float32)]
                          if need_acc_scratch else [])

        kernel = functools.partial(
            _fc_kernel,
            compute_dtype=compute_dtype,
            weight_gain=self.weight_gain,
            bias_gain=self.bias_gain,
            activation=self.activation,
            act_gain=self.act_gain,
            has_bias=has_bias,
            single_k=single_k,
            out_is_acc=out_is_f32,
        )

        # VMEM limit derived from the actual footprint (double-buffered tiles),
        # capped at 48 MiB so v7x's 64 MiB physical VMEM keeps headroom.
        footprint = (2 * tm * tk * x_pass_item + 2 * tk * tn * w_item
                     + 2 * tm * tn * out_item
                     + (tm * tn * 4 if need_acc_scratch else 0)
                     + (2 * tn * 4 if has_bias else 0))
        vmem_limit = int(min(48 << 20, max(16 << 20, 2 * footprint)))

        # Bytes reflect actual streaming: x re-read per j-block when k is tiled,
        # weight re-read per i-block unless its block index is constant.
        x_reads = 1 if grid_k == 1 else grid_j
        w_reads = 1 if grid_j * grid_k == 1 else grid_i
        cost = pl.CostEstimate(
            flops=2 * Np * Kp * Mp,
            transcendentals=0,
            bytes_accessed=(Np * Kp * x_pass_item * x_reads
                            + Kp * Mp * w_item * w_reads
                            + (Mp * 4 if has_bias else 0)
                            + Np * Mp * out_item),
        )

        y_p = pl.pallas_call(
            kernel,
            out_shape=jax.ShapeDtypeStruct((Np, Mp), out_dtype),
            grid_spec=pltpu.PrefetchScalarGridSpec(
                num_scalar_prefetch=0,
                grid=(grid_i, grid_j, grid_k),
                in_specs=in_specs,
                out_specs=pl.BlockSpec((tm, tn), lambda i, j, k: (i, j)),
                scratch_shapes=scratch_shapes,
            ),
            compiler_params=pltpu.CompilerParams(
                dimension_semantics=("parallel", "parallel", "arbitrary"),
                vmem_limit_bytes=vmem_limit,
            ),
            cost_estimate=cost,
        )(*inputs)

        if (Np, Mp) != (N, M):
            y_p = y_p[:N, :M]
        return y_p


# ------------------------------ test harness ---------------------------------
def _reference_np(layer, x):
    """float64 numpy ground truth (independent of XLA matmul precision)."""
    x64 = np.asarray(jax.device_get(x)).astype(np.float64)
    w64 = np.asarray(jax.device_get(layer.weight)).astype(np.float64) * layer.weight_gain
    y = x64 @ w64.T
    if layer.bias is not None:
        b64 = np.asarray(jax.device_get(layer.bias)).astype(np.float64) * layer.bias_gain
        y = y + b64[None, :]
    if layer.activation == 'lrelu':
        y = np.where(y >= 0, y, 0.2 * y) * np.sqrt(2.0)
    elif layer.activation == 'relu':
        y = np.maximum(y, 0.0) * np.sqrt(2.0)
    return y


def _check(y, ref, rtol, atol):
    np.testing.assert_allclose(np.asarray(jax.device_get(y)).astype(np.float64),
                               ref, rtol=rtol, atol=atol)


if __name__ == "__main__":
    key = jax.random.PRNGKey(0)
    kx1, kx2, kx3, kx4, kx5, kw1, kw2, kw3, kw4, kw5 = jax.random.split(key, 10)

    TOL_BF16 = dict(rtol=5e-2, atol=5e-2)
    TOL_F32 = dict(rtol=2e-3, atol=2e-3)

    # 1) linear FC, EG3D-like shape (M=384 -> no padding, weight-resident, bf16 MXU).
    x1 = jax.random.normal(kx1, (256, 384), dtype=jnp.float32)
    fc_lin = FullyConnectedLayer(384, 384, bias=True, activation='linear',
                                 lr_multiplier=1, bias_init=0.1, key=kw1)
    y1 = jax.block_until_ready(fc_lin(x1))
    _check(y1, _reference_np(fc_lin, x1), **TOL_BF16)

    # 2) lrelu FC, lr_multiplier != 1 (matmul + bias_act path), bf16 default.
    x2 = jax.random.normal(kx2, (192, 256), dtype=jnp.float32)
    fc_lrelu = FullyConnectedLayer(256, 128, bias=True, activation='lrelu',
                                   lr_multiplier=0.5, bias_init=0.3, key=kw2)
    y2 = jax.block_until_ready(fc_lrelu(x2))
    _check(y2, _reference_np(fc_lrelu, x2), **TOL_BF16)

    # 3) bias=False + relu (no bias operand DMA'd at all).
    x3 = jax.random.normal(kx3, (160, 128), dtype=jnp.float32)
    fc_nobias = FullyConnectedLayer(128, 256, bias=False, activation='relu',
                                    lr_multiplier=1, key=kw3)
    y3 = jax.block_until_ready(fc_nobias(x3))
    _check(y3, _reference_np(fc_nobias, x3), **TOL_BF16)

    # 4) forced full-f32 MXU path (tight tolerance vs float64 reference).
    y4 = jax.block_until_ready(fc_lin(x1, compute_dtype=jnp.float32))
    _check(y4, _reference_np(fc_lin, x1), **TOL_F32)

    # 5) streaming / multi-k path (forced): f32 output accumulates directly in o_ref.
    fc_stream = FullyConnectedLayer(256, 256, bias=True, activation='lrelu',
                                    lr_multiplier=1, bias_init=0.05, key=kw4)
    fc_stream.weight_resident_bytes = 0    # force the k-tiled streaming path
    fc_stream.max_tk = 128                 # force grid_k = 2
    x5 = jax.random.normal(kx5, (128, 256), dtype=jnp.float32)
    y5 = jax.block_until_ready(fc_stream(x5, compute_dtype=jnp.float32))
    _check(y5, _reference_np(fc_stream, x5), **TOL_F32)

    # 6) multi-k with bf16 input/output (uses the f32 accumulator scratch).
    x6 = x5.astype(jnp.bfloat16)
    y6 = jax.block_until_ready(fc_stream(x6))
    _check(y6, _reference_np(fc_stream, x6), **TOL_BF16)

    # 7) awkward shapes (N not %8, M not %128): exercises pad + output slice glue.
    x7 = jax.random.normal(kx4, (300, 160), dtype=jnp.float32)
    fc_odd = FullyConnectedLayer(160, 200, bias=True, activation='lrelu',
                                 lr_multiplier=1, bias_init=0.2, key=kw5)
    y7 = jax.block_until_ready(fc_odd(x7))
    _check(y7, _reference_np(fc_odd, x7), **TOL_BF16)

    # 8) tiny problem takes the XLA fallback (Pallas overhead not worth it).
    x8 = jax.random.normal(kx1, (8, 32), dtype=jnp.float32)
    fc_tiny = FullyConnectedLayer(32, 32, bias=True, activation='lrelu',
                                  lr_multiplier=1, bias_init=0.2, key=kw3)
    y8 = jax.block_until_ready(fc_tiny(x8))
    _check(y8, _reference_np(fc_tiny, x8), rtol=1e-4, atol=1e-4)

    print("KERNEL_OK")
</pallas_src>

<mosaic_0001>
module attributes {stable_mosaic.version = 11 : i64} {
  func.func @_fc_kernel(%arg0: i32, %arg1: i32, %arg2: i32, %arg3: memref<128x384xf32, #tpu.memory_space<vmem>>, %arg4: memref<384x384xbf16, #tpu.memory_space<vmem>>, %arg5: memref<1x384xf32, #tpu.memory_space<vmem>>, %arg6: memref<128x384xf32, #tpu.memory_space<vmem>>) attributes {dimension_semantics = [#tpu.dimension_semantics<parallel>, #tpu.dimension_semantics<parallel>, #tpu.dimension_semantics<arbitrary>], iteration_bounds = array<i64: 2, 1, 1>, scalar_prefetch = 0 : i64, scratch_operands = 0 : i64, tpu.core_type = #tpu.core_type<tc>, window_params = [{transform_indices = @transform_0, window_bounds = array<i64: 128, 384>}, {transform_indices = @transform_1, window_bounds = array<i64: 384, 384>}, {transform_indices = @transform_2, window_bounds = array<i64: 1, 384>}, {transform_indices = @transform_3, window_bounds = array<i64: 128, 384>}]} {
    %c0 = arith.constant 0 : index
    %c0_0 = arith.constant 0 : index
    %0 = vector.load %arg3[%c0, %c0_0] : memref<128x384xf32, #tpu.memory_space<vmem>>, vector<128x384xf32>
    %1 = arith.truncf %0 : vector<128x384xf32> to vector<128x384xbf16>
    %c0_1 = arith.constant 0 : index
    %c0_2 = arith.constant 0 : index
    %2 = vector.load %arg4[%c0_1, %c0_2] : memref<384x384xbf16, #tpu.memory_space<vmem>>, vector<384x384xbf16>
    %cst = arith.constant dense<0.000000e+00> : vector<128x384xf32>
    %3 = tpu.matmul %1, %2, %cst {dimension_numbers = #tpu.dot_dimension_numbers<[1], [0], [0], [1], [0, 0, 1, 1], [], []>} : vector<128x384xbf16>, vector<384x384xbf16>, vector<128x384xf32> -> vector<128x384xf32>
    %cst_3 = arith.constant 0.0510310382 : f32
    %4 = vector.broadcast %cst_3 : f32 to vector<128x384xf32>
    %5 = arith.mulf %3, %4 : vector<128x384xf32>
    %c0_4 = arith.constant 0 : index
    %c0_5 = arith.constant 0 : index
    %6 = vector.load %arg5[%c0_4, %c0_5] : memref<1x384xf32, #tpu.memory_space<vmem>>, vector<1x384xf32>
    %7 = vector.broadcast %6 : vector<1x384xf32> to vector<128x384xf32>
    %8 = arith.addf %5, %7 : vector<128x384xf32>
    %c0_6 = arith.constant 0 : index
    %c0_7 = arith.constant 0 : index
    %9 = vector.load %arg6[%c0_6, %c0_7] : memref<128x384xf32, #tpu.memory_space<vmem>>, vector<128x384xf32>
    tpu.vector_store %arg6[%c0_6, %c0_7], %8 {strides = array<i32>} : memref<128x384xf32, #tpu.memory_space<vmem>>, vector<128x384xf32>,
    return
  }
  func.func @transform_0(%arg0: i32, %arg1: i32, %arg2: i32) -> (i32, i32) {
    %c0_i32 = arith.constant 0 : i32
    return %arg0, %arg2 : i32, i32
  }
  func.func @transform_1(%arg0: i32, %arg1: i32, %arg2: i32) -> (i32, i32) {
    %c0_i32 = arith.constant 0 : i32
    return %arg2, %arg1 : i32, i32
  }
  func.func @transform_2(%arg0: i32, %arg1: i32, %arg2: i32) -> (i32, i32) {
    %c0_i32 = arith.constant 0 : i32
    %c0_i32_0 = arith.constant 0 : i32
    return %c0_i32, %arg1 : i32, i32
  }
  func.func @transform_3(%arg0: i32, %arg1: i32, %arg2: i32) -> (i32, i32) {
    %c0_i32 = arith.constant 0 : i32
    return %arg0, %arg1 : i32, i32
  }
}

</mosaic_0001>

<llo_original>
// kernel: tpu_custom_call.1
$region0: #{tpu_custom_call.1}
  #allocation0 [shape = 'u32[]', space=smem, size = 0x4, offset = 0x4, fixed_abs, tag = 'smem constant byte address 0x4 - core index']
  #allocation1 [shape = 'u32[144,128]{1,0:T(1,128)}', space=vmem, size = 0x12000, scoped, tag = 'internal scratch']
  %s0 = inlined_call_operand.hbm [shape: f32[256,384], index: 0, kind: input, shape index: {}]
  %s1 = inlined_call_operand.hbm [shape: bf16[384,384], index: 1, kind: input, shape index: {}]
  %s2 = inlined_call_operand.vmem [shape: f32[1,384], index: 2, kind: input, shape index: {}]
  %s3 = inlined_call_operand.hbm [shape: f32[256,384], index: 3, kind: output, shape index: {}]
  %s4 = sld [smem:[#allocation0]]
  $region53: #{tpu_custom_call.1} parent=0
    _
  %s6 = ssub.s32 1, %s4
  %s7 = scalar_select 0, %s6, %s4
  $region1: #{tpu_custom_call.1} parent=0
    #allocation2 [shape = 'u8[393216]{0}', space=vmem, size = 0x60000, scoped, tag = 'input window, operand 0']
    #allocation3 [shape = 's32[2]{0}', space=sflag, size = 0x8, scoped, tag = 'scoped memory for tpu_custom_call.1']
    #allocation4 [shape = 's32[2]{0}', space=sflag, size = 0x8, scoped, tag = 'scoped memory for tpu_custom_call.1']
    #allocation5 [shape = 'u8[294912]{0}', space=vmem, size = 0x48000, scoped, tag = 'input window, operand 1, single buffered']
    #allocation6 [shape = 's32[1]{0}', space=sflag, size = 0x4, scoped, tag = 'scoped memory for tpu_custom_call.1']
    #allocation7 [shape = 'u8[393216]{0}', space=vmem, size = 0x60000, scoped, tag = 'output window, operand 0']
    %8 = vsyncpa [#allocation3], 0
    %s9 = scalar_lea.sflag [#allocation3], 1
    %10 = vsyncpa %s9, 0
    %11 = vsyncpa [#allocation6], 0
    %12 = vsyncpa [#allocation4], 0
    %s13 = scalar_lea.sflag [#allocation4], 1
    %14 = vsyncpa %s13, 0
    loop: start=0, step=1, limit=4
    $region2: #{tpu_custom_call.1} parent=1 // loop_pre_header
      _
    $region3: #{tpu_custom_call.1} parent=1 // loop_header
      %s16 = sphi 0, %s20
      %p17 = scmp.ge.s32.totalorder %s16, 4
      %s23 = sphi 0, %s42
      %s24 = sphi 0, %s38
      %s25 = sphi 0, %s34
      %s26 = sphi 0, %s23
      %s27 = sphi 0, %s24
      %s28 = sphi 0, %s25
      %s29 = sphi 0, %s26
      %s30 = sphi 0, %s27
      %s31 = sphi 0, %s28
      %s47 = sphi 0, %s49
      %s50 = sphi 0, %s47
      %s51 = sphi 0, %s50
      %s67 = sphi 0, %s51
      %s75 = sphi 0, %s77
      %s78 = sphi 0, %s75
      %s79 = sphi 0, %s78
      %s95 = sphi 0, %s79
      %s101 = sphi 0, %s103
      %s104 = sphi 0, %s101
      %s105 = sphi 0, %s104
      %s121 = sphi 0, %s105
      %s129 = sphi 0, %s131
      %s132 = sphi 0, %s129
      %s133 = sphi 0, %s132
      %s149 = sphi 0, %s133
    $region4: #{tpu_custom_call.1} parent=1 // loop_header_branch
      %19 = sbr.rel (%p17) target = $region8
    $region5: #{tpu_custom_call.1} parent=1 // loop_body
      %s21 = ssub.s32 %s16, 1
      %s22 = ssub.s32 %s16, 2
      %s32 = sadd.s32 1, %s25
      %p33 = scmp.ge.s32.totalorder %s32, 1
      %s34 = scalar_select %p33, 0, %s32
      %s35 = sadd.s32 1, %s24
      %s36 = scalar_select %p33, %s35, %s24
      %p37 = scmp.ge.s32.totalorder %s36, 1
      %s38 = scalar_select %p37, 0, %s36
      %s39 = sadd.s32 1, %s23
      %s40 = scalar_select %p37, %s39, %s23
      %p41 = scmp.ge.s32.totalorder %s40, 2
      %s42 = scalar_select %p41, 0, %s40
      %s43 = ssub.s32 %s23, %s42
      %s44 = ssub.s32 %s25, %s34
      %s45 = sor.u32 %s43, %s44
      %p46 = scmp.eq.s32.totalorder %s45, 0
      %s48 = sadd.s32 %s47, 1
      %s49 = scalar_select %p46, %s47, %s48
      %p52 = pneg %p46
      %p53 = scmp.eq.s32.totalorder %s16, 1
      %p54 = por %p52, %p53
      %p55 = scmp.ne.s32.totalorder %s47, %s50
      %p56 = scmp.eq.s32.totalorder %s16, 0
      %p57 = por %p55, %p56
      %p58 = scmp.ne.s32.totalorder %s47, %s50
      %p59 = scmp.eq.s32.totalorder %s21, 1
      %p60 = por %p58, %p59
      %p61 = scmp.ne.s32.totalorder %s50, %s51
      %p62 = scmp.eq.s32.totalorder %s21, 0
      %p63 = por %p61, %p62
      %p64 = scmp.ne.s32.totalorder %s50, %s51
      %p65 = scmp.eq.s32.totalorder %s22, 1
      %p66 = por %p64, %p65
      %p68 = scmp.ne.s32.totalorder %s51, %s67
      %p69 = scmp.eq.s32.totalorder %s22, 0
      %p70 = por %p68, %p69
      %s71 = ssub.s32 %s25, %s34
      %s72 = ssub.s32 %s24, %s38
      %s73 = sor.u32 %s71, %s72
      %p74 = scmp.eq.s32.totalorder %s73, 0
      %s76 = sadd.s32 %s75, 1
      %s77 = scalar_select %p74, %s75, %s76
      %p80 = pneg %p74
      %p81 = scmp.eq.s32.totalorder %s16, 1
      %p82 = por %p80, %p81
      %p83 = scmp.ne.s32.totalorder %s75, %s78
      %p84 = scmp.eq.s32.totalorder %s16, 0
      %p85 = por %p83, %p84
      %p86 = scmp.ne.s32.totalorder %s75, %s78
      %p87 = scmp.eq.s32.totalorder %s21, 1
      %p88 = por %p86, %p87
      %p89 = scmp.ne.s32.totalorder %s78, %s79
      %p90 = scmp.eq.s32.totalorder %s21, 0
      %p91 = por %p89, %p90
      %p92 = scmp.ne.s32.totalorder %s78, %s79
      %p93 = scmp.eq.s32.totalorder %s22, 1
      %p94 = por %p92, %p93
      %p96 = scmp.ne.s32.totalorder %s79, %s95
      %p97 = scmp.eq.s32.totalorder %s22, 0
      %p98 = por %p96, %p97
      %s99 = ssub.s32 %s24, %s38
      %p100 = scmp.eq.s32.totalorder %s99, 0
      %s102 = sadd.s32 %s101, 1
      %s103 = scalar_select %p100, %s101, %s102
      %p106 = pneg %p100
      %p107 = scmp.eq.s32.totalorder %s16, 1
      %p108 = por %p106, %p107
      %p109 = scmp.ne.s32.totalorder %s101, %s104
      %p110 = scmp.eq.s32.totalorder %s16, 0
      %p111 = por %p109, %p110
      %p112 = scmp.ne.s32.totalorder %s101, %s104
      %p113 = scmp.eq.s32.totalorder %s21, 1
      %p114 = por %p112, %p113
      %p115 = scmp.ne.s32.totalorder %s104, %s105
      %p116 = scmp.eq.s32.totalorder %s21, 0
      %p117 = por %p115, %p116
      %p118 = scmp.ne.s32.totalorder %s104, %s105
      %p119 = scmp.eq.s32.totalorder %s22, 1
      %p120 = por %p118, %p119
      %p122 = scmp.ne.s32.totalorder %s105, %s121
      %p123 = scmp.eq.s32.totalorder %s22, 0
      %p124 = por %p122, %p123
      %s125 = ssub.s32 %s23, %s42
      %s126 = ssub.s32 %s24, %s38
      %s127 = sor.u32 %s125, %s126
      %p128 = scmp.eq.s32.totalorder %s127, 0
      %s130 = sadd.s32 %s129, 1
      %s131 = scalar_select %p128, %s129, %s130
      %p134 = pneg %p128
      %p135 = scmp.eq.s32.totalorder %s16, 1
      %p136 = por %p134, %p135
      %p137 = scmp.ne.s32.totalorder %s129, %s132
      %p138 = scmp.eq.s32.totalorder %s16, 0
      %p139 = por %p137, %p138
      %p140 = scmp.ne.s32.totalorder %s129, %s132
      %p141 = scmp.eq.s32.totalorder %s21, 1
      %p142 = por %p140, %p141
      %p143 = scmp.ne.s32.totalorder %s132, %s133
      %p144 = scmp.eq.s32.totalorder %s21, 0
      %p145 = por %p143, %p144
      %p146 = scmp.ne.s32.totalorder %s132, %s133
      %p147 = scmp.eq.s32.totalorder %s22, 1
      %p148 = por %p146, %p147
      %p150 = scmp.ne.s32.totalorder %s133, %s149
      %p151 = scmp.eq.s32.totalorder %s22, 0
      %p152 = por %p150, %p151
      %p153 = scmp.le.s32.totalorder 1, %s16
      %p154 = scmp.lt.s32.totalorder %s16, 3
      %p155 = pnand %p153, %p154
      %p156 = pneg %p155
      // Predicated region
      $region9: #{tpu_custom_call.1} parent=5 // pred_check
        _
      $region10: #{tpu_custom_call.1} parent=5 // pred_check_branch
        %158 = sbr.rel (%p155) target = $region12
      $region11: #{tpu_custom_call.1} parent=5 // pred_region
        %s159 = ssub.s32 %s16, 1
        // Predicated region
        $region13: #{tpu_custom_call.1} parent=11 // pred_check
          %p160 = pneg %p91
        $region14: #{tpu_custom_call.1} parent=11 // pred_check_branch
          %162 = sbr.rel (%p160) target = $region16
        $region15: #{tpu_custom_call.1} parent=11 // pred_region
          %s163 = smul.u32 48, %s28
          %s164 = smul.u32 3, %s27
          %s166 = ssub.s32 9216, 9216
          %167 = vsyncadd [#allocation6], %s166
          %s168 = smul.addr %s163, 3
          %s169 = sadd.s32 %s164, %s168
          %s170 = smul.addr %s169, 64
          %s171 = scalar_lea.hbm %s1, %s170
          %s172 = sshll.u32 [#allocation5], 4
          %s173 = int_to_ptr.vmem [resolvable:$true] %s172
          %178 = dma.hbm_to_vmem [thread:$0]  %s171, 9216, %s173, [#allocation6], 192, 192, 12
        $region16: #{tpu_custom_call.1} parent=11 // pred_fallthru
          _
        // Predicated region
        $region17: #{tpu_custom_call.1} parent=11 // pred_check
          %p179 = pneg %p117
        $region18: #{tpu_custom_call.1} parent=11 // pred_check_branch
          %181 = sbr.rel (%p179) target = $region20
        $region19: #{tpu_custom_call.1} parent=11 // pred_region
          %s182 = smul.u32 3, %s27
          %p183 = scmp.lt.s32.totalorder %s182, 2
          %s184 = scalar_select %p183, %s182, 2
          %s185 = scalar_lea.vmem %s2, %s184
          %s186 = smul.u32 3, %s27
        $region20: #{tpu_custom_call.1} parent=11 // pred_fallthru
          _
      $region12: #{tpu_custom_call.1} parent=5 // pred_fallthru
        _
      %p187 = scmp.lt.s32.totalorder %s16, 2
      // Predicated region
      $region21: #{tpu_custom_call.1} parent=5 // pred_check
        %p188 = pneg %p187
      $region22: #{tpu_custom_call.1} parent=5 // pred_check_branch
        %190 = sbr.rel (%p188) target = $region24
      $region23: #{tpu_custom_call.1} parent=5 // pred_region
        // Predicated region
        $region25: #{tpu_custom_call.1} parent=23 // pred_check
          %p191 = pneg %p57
        $region26: #{tpu_custom_call.1} parent=23 // pred_check_branch
          %193 = sbr.rel (%p191) target = $region28
        $region27: #{tpu_custom_call.1} parent=23 // pred_region
          %s194 = sand.u32 %s47, 1
          %s195 = scalar_lea.sflag [#allocation3], %s194
          %s196 = sand.u32 %s47, 1
          %s197 = smul.addr %s196, 384
          %s198 = scalar_lea.vmem [#allocation2], %s197
          %s199 = smul.u32 16, %s23
          %s200 = smul.u32 3, %s25
          %s202 = ssub.s32 6144, 6144
          %203 = vsyncadd %s195, %s202
          %s204 = smul.addr %s199, 3
          %s205 = sadd.s32 %s200, %s204
          %s206 = smul.addr %s205, 128
          %s207 = scalar_lea.hbm %s0, %s206
          %s208 = sshll.u32 %s198, 4
          %s209 = int_to_ptr.vmem [resolvable:$true] %s208
          %214 = dma.hbm_to_vmem [thread:$0]  %s207, 6144, %s209, %s195, 384, 384, 24
        $region28: #{tpu_custom_call.1} parent=23 // pred_fallthru
          _
      $region24: #{tpu_custom_call.1} parent=5 // pred_fallthru
        _
      %p215 = scmp.le.s32.totalorder 1, %s16
      %p216 = scmp.lt.s32.totalorder %s16, 3
      %p217 = pnand %p215, %p216
      %p218 = pneg %p217
      // Predicated region
      $region29: #{tpu_custom_call.1} parent=5 // pred_check
        _
      $region30: #{tpu_custom_call.1} parent=5 // pred_check_branch
        %220 = sbr.rel (%p217) target = $region32
      $region31: #{tpu_custom_call.1} parent=5 // pred_region
        %s221 = ssub.s32 %s16, 1
        %s222 = sand.u32 %s50, 1
        %s223 = scalar_lea.sflag [#allocation3], %s222
        %s224 = sand.u32 %s50, 1
        %s225 = smul.addr %s224, 384
        %s226 = scalar_lea.vmem [#allocation2], %s225
        // Predicated region
        $region33: #{tpu_custom_call.1} parent=31 // pred_check
          %p227 = pneg %p63
        $region34: #{tpu_custom_call.1} parent=31 // pred_check_branch
          %229 = sbr.rel (%p227) target = $region36
        $region35: #{tpu_custom_call.1} parent=31 // pred_region
          %230 = dma.done %s223, 6144
        $region36: #{tpu_custom_call.1} parent=31 // pred_fallthru
          _
        // Predicated region
        $region37: #{tpu_custom_call.1} parent=31 // pred_check
          %p231 = pneg %p91
        $region38: #{tpu_custom_call.1} parent=31 // pred_check_branch
          %233 = sbr.rel (%p231) target = $region40
        $region39: #{tpu_custom_call.1} parent=31 // pred_region
          %234 = dma.done [#allocation6], 9216
        $region40: #{tpu_custom_call.1} parent=31 // pred_fallthru
          _
        %s235 = sand.u32 %s50, 1
        %s236 = scalar_lea.sflag [#allocation3], %s235
        %s237 = sand.u32 %s50, 1
        %s238 = smul.addr %s237, 384
        %s239 = scalar_lea.vmem [#allocation2], %s238
        %p240 = pneg %p63
        %p241 = pneg %p60
        %p242 = pneg %p91
        %p243 = pneg %p88
        %s244 = smul.u32 3, %s27
        %p245 = scmp.lt.s32.totalorder %s244, 2
        %s246 = scalar_select %p245, %s244, 2
        %s247 = scalar_lea.vmem %s2, %s246
        %p248 = pneg %p117
        %p249 = pneg %p114
        %p250 = pneg %p145
        %p251 = pneg %p142
        %s252 = sand.u32 %s132, 1
        %s253 = scalar_lea.sflag [#allocation4], %s252
        %s254 = sand.u32 %s132, 1
        %s255 = smul.addr %s254, 384
        %s256 = scalar_lea.vmem [#allocation7], %s255
        %s257 = smul.u32 16, %s26
        %s258 = smul.u32 3, %s28
        %s259 = smul.u32 48, %s28
        %s260 = smul.u32 3, %s27
        %s261 = smul.u32 3, %s27
        %p262 = scmp.lt.s32.totalorder %s261, 2
        %s263 = scalar_select %p262, %s261, 2
        %s264 = scalar_lea.vmem %s2, %s263
        %s265 = smul.u32 3, %s27
        %s266 = smul.u32 16, %s26
        %s267 = smul.u32 3, %s27
        %v269 = vld [vmem:[%s226] sm:$0xff]
        %v270 = vld [vmem:[%s226 + $0x8] sm:$0xff]
        %v271 = vld [vmem:[%s226 + $0x10] sm:$0xff]
        %v272 = vld [vmem:[%s226 + $0x18] sm:$0xff]
        %v273 = vld [vmem:[%s226 + $0x20] sm:$0xff]
        %v274 = vld [vmem:[%s226 + $0x28] sm:$0xff]
        %v275 = vld [vmem:[%s226 + $0x30] sm:$0xff]
        %v276 = vld [vmem:[%s226 + $0x38] sm:$0xff]
        %v277 = vld [vmem:[%s226 + $0x40] sm:$0xff]
        %v278 = vld [vmem:[%s226 + $0x48] sm:$0xff]
        %v279 = vld [vmem:[%s226 + $0x50] sm:$0xff]
        %v280 = vld [vmem:[%s226 + $0x58] sm:$0xff]
        %v281 = vld [vmem:[%s226 + $0x60] sm:$0xff]
        %v282 = vld [vmem:[%s226 + $0x68] sm:$0xff]
        %v283 = vld [vmem:[%s226 + $0x70] sm:$0xff]
        %v284 = vld [vmem:[%s226 + $0x78] sm:$0xff]
        %v285 = vld [vmem:[%s226 + $0x80] sm:$0xff]
        %v286 = vld [vmem:[%s226 + $0x88] sm:$0xff]
        %v287 = vld [vmem:[%s226 + $0x90] sm:$0xff]
        %v288 = vld [vmem:[%s226 + $0x98] sm:$0xff]
        %v289 = vld [vmem:[%s226 + $0xa0] sm:$0xff]
        %v290 = vld [vmem:[%s226 + $0xa8] sm:$0xff]
        %v291 = vld [vmem:[%s226 + $0xb0] sm:$0xff]
        %v292 = vld [vmem:[%s226 + $0xb8] sm:$0xff]
        %v293 = vld [vmem:[%s226 + $0xc0] sm:$0xff]
        %v294 = vld [vmem:[%s226 + $0xc8] sm:$0xff]
        %v295 = vld [vmem:[%s226 + $0xd0] sm:$0xff]
        %v296 = vld [vmem:[%s226 + $0xd8] sm:$0xff]
        %v297 = vld [vmem:[%s226 + $0xe0] sm:$0xff]
        %v298 = vld [vmem:[%s226 + $0xe8] sm:$0xff]
        %v299 = vld [vmem:[%s226 + $0xf0] sm:$0xff]
        %v300 = vld [vmem:[%s226 + $0xf8] sm:$0xff]
        %v301 = vld [vmem:[%s226 + $0x100] sm:$0xff]
        %v302 = vld [vmem:[%s226 + $0x108] sm:$0xff]
        %v303 = vld [vmem:[%s226 + $0x110] sm:$0xff]
        %v304 = vld [vmem:[%s226 + $0x118] sm:$0xff]
        %v305 = vld [vmem:[%s226 + $0x120] sm:$0xff]
        %v306 = vld [vmem:[%s226 + $0x128] sm:$0xff]
        %v307 = vld [vmem:[%s226 + $0x130] sm:$0xff]
        %v308 = vld [vmem:[%s226 + $0x138] sm:$0xff]
        %v309 = vld [vmem:[%s226 + $0x140] sm:$0xff]
        %v310 = vld [vmem:[%s226 + $0x148] sm:$0xff]
        %v311 = vld [vmem:[%s226 + $0x150] sm:$0xff]
        %v312 = vld [vmem:[%s226 + $0x158] sm:$0xff]
        %v313 = vld [vmem:[%s226 + $0x160] sm:$0xff]
        %v314 = vld [vmem:[%s226 + $0x168] sm:$0xff]
        %v315 = vld [vmem:[%s226 + $0x170] sm:$0xff]
        %v316 = vld [vmem:[%s226 + $0x178] sm:$0xff]
        %v317 = vpack.c.bf16 %v272, %v269
        %v318 = vpack.c.bf16 %v273, %v270
        %v319 = vpack.c.bf16 %v274, %v271
        %v320 = vpack.c.bf16 %v278, %v275
        %v321 = vpack.c.bf16 %v279, %v276
        %v322 = vpack.c.bf16 %v280, %v277
        %v323 = vpack.c.bf16 %v284, %v281
        %v324 = vpack.c.bf16 %v285, %v282
        %v325 = vpack.c.bf16 %v286, %v283
        %v326 = vpack.c.bf16 %v290, %v287
        %v327 = vpack.c.bf16 %v291, %v288
        %v328 = vpack.c.bf16 %v292, %v289
        %v329 = vpack.c.bf16 %v296, %v293
        %v330 = vpack.c.bf16 %v297, %v294
        %v331 = vpack.c.bf16 %v298, %v295
        %v332 = vpack.c.bf16 %v302, %v299
        %v333 = vpack.c.bf16 %v303, %v300
        %v334 = vpack.c.bf16 %v304, %v301
        %v335 = vpack.c.bf16 %v308, %v305
        %v336 = vpack.c.bf16 %v309, %v306
        %v337 = vpack.c.bf16 %v310, %v307
        %v338 = vpack.c.bf16 %v314, %v311
        %v339 = vpack.c.bf16 %v315, %v312
        %v340 = vpack.c.bf16 %v316, %v313
        %v341 = vld [vmem:[#allocation5] sm:$0xff]
        %v342 = vld [vmem:[#allocation5 + $0x8] sm:$0xf]
        %v343 = vld [vmem:[#allocation5 + $0xc] sm:$0xff]
        %v344 = vld [vmem:[#allocation5 + $0x14] sm:$0xf]
        %v345 = vld [vmem:[#allocation5 + $0x18] sm:$0xff]
        %v346 = vld [vmem:[#allocation5 + $0x20] sm:$0xf]
        %v347 = vld [vmem:[#allocation5 + $0x24] sm:$0xff]
        %v348 = vld [vmem:[#allocation5 + $0x2c] sm:$0xf]
        %v349 = vld [vmem:[#allocation5 + $0x30] sm:$0xff]
        %v350 = vld [vmem:[#allocation5 + $0x38] sm:$0xf]
        %v351 = vld [vmem:[#allocation5 + $0x3c] sm:$0xff]
        %v352 = vld [vmem:[#allocation5 + $0x44] sm:$0xf]
        %v353 = vld [vmem:[#allocation5 + $0x48] sm:$0xff]
        %v354 = vld [vmem:[#allocation5 + $0x50] sm:$0xf]
        %v355 = vld [vmem:[#allocation5 + $0x54] sm:$0xff]
        %v356 = vld [vmem:[#allocation5 + $0x5c] sm:$0xf]
        %v357 = vld [vmem:[#allocation5 + $0x60] sm:$0xff]
        %v358 = vld [vmem:[#allocation5 + $0x68] sm:$0xf]
        %v359 = vld [vmem:[#allocation5 + $0x6c] sm:$0xff]
        %v360 = vld [vmem:[#allocation5 + $0x74] sm:$0xf]
        %v361 = vld [vmem:[#allocation5 + $0x78] sm:$0xff]
        %v362 = vld [vmem:[#allocation5 + $0x80] sm:$0xf]
        %v363 = vld [vmem:[#allocation5 + $0x84] sm:$0xff]
        %v364 = vld [vmem:[#allocation5 + $0x8c] sm:$0xf]
        %v365 = vld [vmem:[#allocation5 + $0x90] sm:$0xff]
        %v366 = vld [vmem:[#allocation5 + $0x98] sm:$0xf]
        %v367 = vld [vmem:[#allocation5 + $0x9c] sm:$0xff]
        %v368 = vld [vmem:[#allocation5 + $0xa4] sm:$0xf]
        %v369 = vld [vmem:[#allocation5 + $0xa8] sm:$0xff]
        %v370 = vld [vmem:[#allocation5 + $0xb0] sm:$0xf]
        %v371 = vld [vmem:[#allocation5 + $0xb4] sm:$0xff]
        %v372 = vld [vmem:[#allocation5 + $0xbc] sm:$0xf]
        %v373 = vld [vmem:[#allocation5 + $0xc0] sm:$0xff]
        %v374 = vld [vmem:[#allocation5 + $0xc8] sm:$0xf]
        %v375 = vld [vmem:[#allocation5 + $0xcc] sm:$0xff]
        %v376 = vld [vmem:[#allocation5 + $0xd4] sm:$0xf]
        %v377 = vld [vmem:[#allocation5 + $0xd8] sm:$0xff]
        %v378 = vld [vmem:[#allocation5 + $0xe0] sm:$0xf]
        %v379 = vld [vmem:[#allocation5 + $0xe4] sm:$0xff]
        %v380 = vld [vmem:[#allocation5 + $0xec] sm:$0xf]
        %v381 = vld [vmem:[#allocation5 + $0xf0] sm:$0xff]
        %v382 = vld [vmem:[#allocation5 + $0xf8] sm:$0xf]
        %v383 = vld [vmem:[#allocation5 + $0xfc] sm:$0xff]
        %v384 = vld [vmem:[#allocation5 + $0x104] sm:$0xf]
        %v385 = vld [vmem:[#allocation5 + $0x108] sm:$0xff]
        %v386 = vld [vmem:[#allocation5 + $0x110] sm:$0xf]
        %v387 = vld [vmem:[#allocation5 + $0x114] sm:$0xff]
        %v388 = vld [vmem:[#allocation5 + $0x11c] sm:$0xf]
        %v389 = vld [vmem:[#allocation5 + $0x120] sm:$0xff]
        %v390 = vld [vmem:[#allocation5 + $0x128] sm:$0xf]
        %v391 = vld [vmem:[#allocation5 + $0x12c] sm:$0xff]
        %v392 = vld [vmem:[#allocation5 + $0x134] sm:$0xf]
        %v393 = vld [vmem:[#allocation5 + $0x138] sm:$0xff]
        %v394 = vld [vmem:[#allocation5 + $0x140] sm:$0xf]
        %v395 = vld [vmem:[#allocation5 + $0x144] sm:$0xff]
        %v396 = vld [vmem:[#allocation5 + $0x14c] sm:$0xf]
        %v397 = vld [vmem:[#allocation5 + $0x150] sm:$0xff]
        %v398 = vld [vmem:[#allocation5 + $0x158] sm:$0xf]
        %v399 = vld [vmem:[#allocation5 + $0x15c] sm:$0xff]
        %v400 = vld [vmem:[#allocation5 + $0x164] sm:$0xf]
        %v401 = vld [vmem:[#allocation5 + $0x168] sm:$0xff]
        %v402 = vld [vmem:[#allocation5 + $0x170] sm:$0xf]
        %v403 = vld [vmem:[#allocation5 + $0x174] sm:$0xff]
        %v404 = vld [vmem:[#allocation5 + $0x17c] sm:$0xf]
        %v405 = vld [vmem:[#allocation5 + $0x180] sm:$0xff]
        %v406 = vld [vmem:[#allocation5 + $0x188] sm:$0xf]
        %v407 = vld [vmem:[#allocation5 + $0x18c] sm:$0xff]
        %v408 = vld [vmem:[#allocation5 + $0x194] sm:$0xf]
        %v409 = vld [vmem:[#allocation5 + $0x198] sm:$0xff]
        %v410 = vld [vmem:[#allocation5 + $0x1a0] sm:$0xf]
        %v411 = vld [vmem:[#allocation5 + $0x1a4] sm:$0xff]
        %v412 = vld [vmem:[#allocation5 + $0x1ac] sm:$0xf]
        %v413 = vld [vmem:[#allocation5 + $0x1b0] sm:$0xff]
        %v414 = vld [vmem:[#allocation5 + $0x1b8] sm:$0xf]
        %v415 = vld [vmem:[#allocation5 + $0x1bc] sm:$0xff]
        %v416 = vld [vmem:[#allocation5 + $0x1c4] sm:$0xf]
        %v417 = vld [vmem:[#allocation5 + $0x1c8] sm:$0xff]
        %v418 = vld [vmem:[#allocation5 + $0x1d0] sm:$0xf]
        %v419 = vld [vmem:[#allocation5 + $0x1d4] sm:$0xff]
        %v420 = vld [vmem:[#allocation5 + $0x1dc] sm:$0xf]
        %v421 = vld [vmem:[#allocation5 + $0x1e0] sm:$0xff]
        %v422 = vld [vmem:[#allocation5 + $0x1e8] sm:$0xf]
        %v423 = vld [vmem:[#allocation5 + $0x1ec] sm:$0xff]
        %v424 = vld [vmem:[#allocation5 + $0x1f4] sm:$0xf]
        %v425 = vld [vmem:[#allocation5 + $0x1f8] sm:$0xff]
        %v426 = vld [vmem:[#allocation5 + $0x200] sm:$0xf]
        %v427 = vld [vmem:[#allocation5 + $0x204] sm:$0xff]
        %v428 = vld [vmem:[#allocation5 + $0x20c] sm:$0xf]
        %v429 = vld [vmem:[#allocation5 + $0x210] sm:$0xff]
        %v430 = vld [vmem:[#allocation5 + $0x218] sm:$0xf]
        %v431 = vld [vmem:[#allocation5 + $0x21c] sm:$0xff]
        %v432 = vld [vmem:[#allocation5 + $0x224] sm:$0xf]
        %v433 = vld [vmem:[#allocation5 + $0x228] sm:$0xff]
        %v434 = vld [vmem:[#allocation5 + $0x230] sm:$0xf]
        %v435 = vld [vmem:[#allocation5 + $0x234] sm:$0xff]
        %v436 = vld [vmem:[#allocation5 + $0x23c] sm:$0xf]
        %v533 = vunpack.c.l.b16 %v341
        %v534 = vunpack.c.h.b16 %v341
        %v535 = vunpack.c.l.b16 %v342
        %v536 = vunpack.c.l.b16 %v343
        %v537 = vunpack.c.h.b16 %v343
        %v538 = vunpack.c.l.b16 %v344
        %v539 = vunpack.c.l.b16 %v345
        %v540 = vunpack.c.h.b16 %v345
        %v541 = vunpack.c.l.b16 %v346
        %v542 = vunpack.c.l.b16 %v347
        %v543 = vunpack.c.h.b16 %v347
        %v544 = vunpack.c.l.b16 %v348
        %v545 = vunpack.c.l.b16 %v349
        %v546 = vunpack.c.h.b16 %v349
        %v547 = vunpack.c.l.b16 %v350
        %v548 = vunpack.c.l.b16 %v351
        %v549 = vunpack.c.h.b16 %v351
        %v550 = vunpack.c.l.b16 %v352
        %v551 = vunpack.c.l.b16 %v353
        %v552 = vunpack.c.h.b16 %v353
        %v553 = vunpack.c.l.b16 %v354
        %v554 = vunpack.c.l.b16 %v355
        %v555 = vunpack.c.h.b16 %v355
        %v556 = vunpack.c.l.b16 %v356
        %v557 = vunpack.c.l.b16 %v357
        %v558 = vunpack.c.h.b16 %v357
        %v559 = vunpack.c.l.b16 %v358
        %v560 = vunpack.c.l.b16 %v359
        %v561 = vunpack.c.h.b16 %v359
        %v562 = vunpack.c.l.b16 %v360
        %v563 = vunpack.c.l.b16 %v361
        %v564 = vunpack.c.h.b16 %v361
        %v565 = vunpack.c.l.b16 %v362
        %v566 = vunpack.c.l.b16 %v363
        %v567 = vunpack.c.h.b16 %v363
        %v568 = vunpack.c.l.b16 %v364
        %v569 = vunpack.c.l.b16 %v365
        %v570 = vunpack.c.h.b16 %v365
        %v571 = vunpack.c.l.b16 %v366
        %v572 = vunpack.c.l.b16 %v367
        %v573 = vunpack.c.h.b16 %v367
        %v574 = vunpack.c.l.b16 %v368
        %v575 = vunpack.c.l.b16 %v369
        %v576 = vunpack.c.h.b16 %v369
        %v577 = vunpack.c.l.b16 %v370
        %v578 = vunpack.c.l.b16 %v371
        %v579 = vunpack.c.h.b16 %v371
        %v580 = vunpack.c.l.b16 %v372
        %v581 = vunpack.c.l.b16 %v373
        %v582 = vunpack.c.h.b16 %v373
        %v583 = vunpack.c.l.b16 %v374
        %v584 = vunpack.c.l.b16 %v375
        %v585 = vunpack.c.h.b16 %v375
        %v586 = vunpack.c.l.b16 %v376
        %v587 = vunpack.c.l.b16 %v377
        %v588 = vunpack.c.h.b16 %v377
        %v589 = vunpack.c.l.b16 %v378
        %v590 = vunpack.c.l.b16 %v379
        %v591 = vunpack.c.h.b16 %v379
        %v592 = vunpack.c.l.b16 %v380
        %v593 = vunpack.c.l.b16 %v381
        %v594 = vunpack.c.h.b16 %v381
        %v595 = vunpack.c.l.b16 %v382
        %v596 = vunpack.c.l.b16 %v383
        %v597 = vunpack.c.h.b16 %v383
        %v598 = vunpack.c.l.b16 %v384
        %v599 = vunpack.c.l.b16 %v385
        %v600 = vunpack.c.h.b16 %v385
        %v601 = vunpack.c.l.b16 %v386
        %v602 = vunpack.c.l.b16 %v387
        %v603 = vunpack.c.h.b16 %v387
        %v604 = vunpack.c.l.b16 %v388
        %v605 = vunpack.c.l.b16 %v389
        %v606 = vunpack.c.h.b16 %v389
        %v607 = vunpack.c.l.b16 %v390
        %v608 = vunpack.c.l.b16 %v391
        %v609 = vunpack.c.h.b16 %v391
        %v610 = vunpack.c.l.b16 %v392
        %v611 = vunpack.c.l.b16 %v393
        %v612 = vunpack.c.h.b16 %v393
        %v613 = vunpack.c.l.b16 %v394
        %v614 = vunpack.c.l.b16 %v395
        %v615 = vunpack.c.h.b16 %v395
        %v616 = vunpack.c.l.b16 %v396
        %v617 = vunpack.c.l.b16 %v397
        %v618 = vunpack.c.h.b16 %v397
        %v619 = vunpack.c.l.b16 %v398
        %v620 = vunpack.c.l.b16 %v399
        %v621 = vunpack.c.h.b16 %v399
        %v622 = vunpack.c.l.b16 %v400
        %v623 = vunpack.c.l.b16 %v401
        %v624 = vunpack.c.h.b16 %v401
        %v625 = vunpack.c.l.b16 %v402
        %v626 = vunpack.c.l.b16 %v403
        %v627 = vunpack.c.h.b16 %v403
        %v628 = vunpack.c.l.b16 %v404
        %v629 = vunpack.c.l.b16 %v405
        %v630 = vunpack.c.h.b16 %v405
        %v631 = vunpack.c.l.b16 %v406
        %v632 = vunpack.c.l.b16 %v407
        %v633 = vunpack.c.h.b16 %v407
        %v634 = vunpack.c.l.b16 %v408
        %v635 = vunpack.c.l.b16 %v409
        %v636 = vunpack.c.h.b16 %v409
        %v637 = vunpack.c.l.b16 %v410
        %v638 = vunpack.c.l.b16 %v411
        %v639 = vunpack.c.h.b16 %v411
        %v640 = vunpack.c.l.b16 %v412
        %v641 = vunpack.c.l.b16 %v413
        %v642 = vunpack.c.h.b16 %v413
        %v643 = vunpack.c.l.b16 %v414
        %v644 = vunpack.c.l.b16 %v415
        %v645 = vunpack.c.h.b16 %v415
        %v646 = vunpack.c.l.b16 %v416
        %v647 = vunpack.c.l.b16 %v417
        %v648 = vunpack.c.h.b16 %v417
        %v649 = vunpack.c.l.b16 %v418
        %v650 = vunpack.c.l.b16 %v419
        %v651 = vunpack.c.h.b16 %v419
        %v652 = vunpack.c.l.b16 %v420
        %v653 = vunpack.c.l.b16 %v421
        %v654 = vunpack.c.h.b16 %v421
        %v655 = vunpack.c.l.b16 %v422
        %v656 = vunpack.c.l.b16 %v423
        %v657 = vunpack.c.h.b16 %v423
        %v658 = vunpack.c.l.b16 %v424
        %v659 = vunpack.c.l.b16 %v425
        %v660 = vunpack.c.h.b16 %v425
        %v661 = vunpack.c.l.b16 %v426
        %v662 = vunpack.c.l.b16 %v427
        %v663 = vunpack.c.h.b16 %v427
        %v664 = vunpack.c.l.b16 %v428
        %v665 = vunpack.c.l.b16 %v429
        %v666 = vunpack.c.h.b16 %v429
        %v667 = vunpack.c.l.b16 %v430
        %v668 = vunpack.c.l.b16 %v431
        %v669 = vunpack.c.h.b16 %v431
        %v670 = vunpack.c.l.b16 %v432
        %v671 = vunpack.c.l.b16 %v433
        %v672 = vunpack.c.h.b16 %v433
        %v673 = vunpack.c.l.b16 %v434
        %v674 = vunpack.c.l.b16 %v435
        %v675 = vunpack.c.h.b16 %v435
        %v676 = vunpack.c.l.b16 %v436
        %v677 = vpack.c.b16 %v536, %v533
        %v678 = vpack.c.b16 %v537, %v534
        %v679 = vpack.c.b16 %v538, %v535
        %v680 = vpack.c.b16 %v542, %v539
        %v681 = vpack.c.b16 %v543, %v540
        %v682 = vpack.c.b16 %v544, %v541
        %v683 = vpack.c.b16 %v548, %v545
        %v684 = vpack.c.b16 %v549, %v546
        %v685 = vpack.c.b16 %v550, %v547
        %v686 = vpack.c.b16 %v554, %v551
        %v687 = vpack.c.b16 %v555, %v552
        %v688 = vpack.c.b16 %v556, %v553
        %v689 = vpack.c.b16 %v560, %v557
        %v690 = vpack.c.b16 %v561, %v558
        %v691 = vpack.c.b16 %v562, %v559
        %v692 = vpack.c.b16 %v566, %v563
        %v693 = vpack.c.b16 %v567, %v564
        %v694 = vpack.c.b16 %v568, %v565
        %v695 = vpack.c.b16 %v572, %v569
        %v696 = vpack.c.b16 %v573, %v570
        %v697 = vpack.c.b16 %v574, %v571
        %v698 = vpack.c.b16 %v578, %v575
        %v699 = vpack.c.b16 %v579, %v576
        %v700 = vpack.c.b16 %v580, %v577
        %v701 = vpack.c.b16 %v584, %v581
        %v702 = vpack.c.b16 %v585, %v582
        %v703 = vpack.c.b16 %v586, %v583
        %v704 = vpack.c.b16 %v590, %v587
        %v705 = vpack.c.b16 %v591, %v588
        %v706 = vpack.c.b16 %v592, %v589
        %v707 = vpack.c.b16 %v596, %v593
        %v708 = vpack.c.b16 %v597, %v594
        %v709 = vpack.c.b16 %v598, %v595
        %v710 = vpack.c.b16 %v602, %v599
        %v711 = vpack.c.b16 %v603, %v600
        %v712 = vpack.c.b16 %v604, %v601
        %v713 = vpack.c.b16 %v608, %v605
        %v714 = vpack.c.b16 %v609, %v606
        %v715 = vpack.c.b16 %v610, %v607
        %v716 = vpack.c.b16 %v614, %v611
        %v717 = vpack.c.b16 %v615, %v612
        %v718 = vpack.c.b16 %v616, %v613
        %v719 = vpack.c.b16 %v620, %v617
        %v720 = vpack.c.b16 %v621, %v618
        %v721 = vpack.c.b16 %v622, %v619
        %v722 = vpack.c.b16 %v626, %v623
        %v723 = vpack.c.b16 %v627, %v624
        %v724 = vpack.c.b16 %v628, %v625
        %v725 = vpack.c.b16 %v632, %v629
        %v726 = vpack.c.b16 %v633, %v630
        %v727 = vpack.c.b16 %v634, %v631
        %v728 = vpack.c.b16 %v638, %v635
        %v729 = vpack.c.b16 %v639, %v636
        %v730 = vpack.c.b16 %v640, %v637
        %v731 = vpack.c.b16 %v644, %v641
        %v732 = vpack.c.b16 %v645, %v642
        %v733 = vpack.c.b16 %v646, %v643
        %v734 = vpack.c.b16 %v650, %v647
        %v735 = vpack.c.b16 %v651, %v648
        %v736 = vpack.c.b16 %v652, %v649
        %v737 = vpack.c.b16 %v656, %v653
        %v738 = vpack.c.b16 %v657, %v654
        %v739 = vpack.c.b16 %v658, %v655
        %v740 = vpack.c.b16 %v662, %v659
        %v741 = vpack.c.b16 %v663, %v660
        %v742 = vpack.c.b16 %v664, %v661
        %v743 = vpack.c.b16 %v668, %v665
        %v744 = vpack.c.b16 %v669, %v666
        %v745 = vpack.c.b16 %v670, %v667
        %v746 = vpack.c.b16 %v674, %v671
        %v747 = vpack.c.b16 %v675, %v672
        %v748 = vpack.c.b16 %v676, %v673
        %821 = vmatprep.subr.bf16.mxu0 %v678
        %822 = vmatpush1.bf16.msra.mxu0 %v677
        %823 = vmatprep.subr.bf16.mxu0 %v681
        %824 = vmatpush1.bf16.msra.mxu0 %v680
        %825 = vmatprep.subr.bf16.mxu0 %v684
        %826 = vmatpush1.bf16.msra.mxu0 %v683
        %827 = vmatprep.subr.bf16.mxu0 %v687
        %828 = vmatpush1.bf16.msra.mxu0 %v686
        %829 = vmatprep.subr.bf16.mxu0 %v690
        %830 = vmatpush1.bf16.msra.mxu0 %v689
        %831 = vmatprep.subr.bf16.mxu0 %v693
        %832 = vmatpush1.bf16.msra.mxu0 %v692
        %833 = vmatprep.subr.bf16.mxu0 %v696
        %834 = vmatpush1.bf16.msra.mxu0 %v695
        %835 = vmatprep.subr.bf16.mxu0 %v699
        %836 = vmatpush1.bf16.msra.mxu0 %v698
        %837 = vmatprep.subr.bf16.mxu0 %v702
        %838 = vmatpush1.bf16.msra.mxu0 %v701
        %839 = vmatprep.subr.bf16.mxu0 %v705
        %840 = vmatpush1.bf16.msra.mxu0 %v704
        %841 = vmatprep.subr.bf16.mxu0 %v708
        %842 = vmatpush1.bf16.msra.mxu0 %v707
        %843 = vmatprep.subr.bf16.mxu0 %v711
        %844 = vmatpush1.bf16.msra.mxu0 %v710
        %845 = vmatprep.subr.bf16.mxu0 %v714
        %846 = vmatpush1.bf16.msra.mxu0 %v713
        %847 = vmatprep.subr.bf16.mxu0 %v717
        %848 = vmatpush1.bf16.msra.mxu0 %v716
        %849 = vmatprep.subr.bf16.mxu0 %v720
        %850 = vmatpush1.bf16.msra.mxu0 %v719
        %851 = vmatprep.subr.bf16.mxu0 %v723
        %852 = vmatpush1.bf16.msra.mxu0 %v722
        %853 = vmatprep.mubr.bf16.mxu0 %v318
        %854 = vmatmul.mubr.bf16.gmra.mrb[0].mxu0 %v317
        %v855 = vpop.f32.mrb[0].mxu0
        %v856 = vadd.f32 0.0, %v855
        %v857 = vpop.f32.mrb[0].mxu0
        %v858 = vadd.f32 0.0, %v857
        %v859 = vpop.f32.mrb[0].mxu0
        %v860 = vadd.f32 0.0, %v859
        %v861 = vpop.f32.mrb[0].mxu0
        %v862 = vadd.f32 0.0, %v861
        %863 = vmatprep.mubr.bf16.mxu0 %v321
        %864 = vmatmul.mubr.bf16.gmra.mrb[0].mxu0 %v320
        %v865 = vpop.f32.mrb[0].mxu0
        %v866 = vadd.f32 0.0, %v865
        %v867 = vpop.f32.mrb[0].mxu0
        %v868 = vadd.f32 0.0, %v867
        %v869 = vpop.f32.mrb[0].mxu0
        %v870 = vadd.f32 0.0, %v869
        %v871 = vpop.f32.mrb[0].mxu0
        %v872 = vadd.f32 0.0, %v871
        %873 = vmatprep.mubr.bf16.mxu0 %v324
        %874 = vmatmul.mubr.bf16.gmra.mrb[0].mxu0 %v323
        %v875 = vpop.f32.mrb[0].mxu0
        %v876 = vadd.f32 0.0, %v875
        %v877 = vpop.f32.mrb[0].mxu0
        %v878 = vadd.f32 0.0, %v877
        %v879 = vpop.f32.mrb[0].mxu0
        %v880 = vadd.f32 0.0, %v879
        %v881 = vpop.f32.mrb[0].mxu0
        %v882 = vadd.f32 0.0, %v881
        %883 = vmatprep.mubr.bf16.mxu0 %v327
        %884 = vmatmul.mubr.bf16.gmra.mrb[0].mxu0 %v326
        %v885 = vpop.f32.mrb[0].mxu0
        %v886 = vadd.f32 0.0, %v885
        %v887 = vpop.f32.mrb[0].mxu0
        %v888 = vadd.f32 0.0, %v887
        %v889 = vpop.f32.mrb[0].mxu0
        %v890 = vadd.f32 0.0, %v889
        %v891 = vpop.f32.mrb[0].mxu0
        %v892 = vadd.f32 0.0, %v891
        %893 = vmatprep.mubr.bf16.mxu0 %v330
        %894 = vmatmul.mubr.bf16.gmra.mrb[0].mxu0 %v329
        %v895 = vpop.f32.mrb[0].mxu0
        %v896 = vadd.f32 0.0, %v895
        %v897 = vpop.f32.mrb[0].mxu0
        %v898 = vadd.f32 0.0, %v897
        %v899 = vpop.f32.mrb[0].mxu0
        %v900 = vadd.f32 0.0, %v899
        %v901 = vpop.f32.mrb[0].mxu0
        %v902 = vadd.f32 0.0, %v901
        %903 = vmatprep.mubr.bf16.mxu0 %v333
        %904 = vmatmul.mubr.bf16.gmra.mrb[0].mxu0 %v332
        %v905 = vpop.f32.mrb[0].mxu0
        %v906 = vadd.f32 0.0, %v905
        %v907 = vpop.f32.mrb[0].mxu0
        %v908 = vadd.f32 0.0, %v907
        %v909 = vpop.f32.mrb[0].mxu0
        %v910 = vadd.f32 0.0, %v909
        %v911 = vpop.f32.mrb[0].mxu0
        %v912 = vadd.f32 0.0, %v911
        %913 = vmatprep.mubr.bf16.mxu0 %v336
        %914 = vmatmul.mubr.bf16.gmra.mrb[0].mxu0 %v335
        %v915 = vpop.f32.mrb[0].mxu0
        %v916 = vadd.f32 0.0, %v915
        %v917 = vpop.f32.mrb[0].mxu0
        %v918 = vadd.f32 0.0, %v917
        %v919 = vpop.f32.mrb[0].mxu0
        %v920 = vadd.f32 0.0, %v919
        %v921 = vpop.f32.mrb[0].mxu0
        %v922 = vadd.f32 0.0, %v921
        %923 = vmatprep.mubr.bf16.mxu0 %v339
        %924 = vmatmul.mubr.bf16.gmra.mrb[0].mxu0 %v338
        %v925 = vpop.f32.mrb[0].mxu0
        %v926 = vadd.f32 0.0, %v925
        %v927 = vpop.f32.mrb[0].mxu0
        %v928 = vadd.f32 0.0, %v927
        %v929 = vpop.f32.mrb[0].mxu0
        %v930 = vadd.f32 0.0, %v929
        %v931 = vpop.f32.mrb[0].mxu0
        %v932 = vadd.f32 0.0, %v931
        %933 = vdwg.mxu0
        %934 = vmatprep.subr.bf16.mxu0 %v726
        %935 = vmatpush1.bf16.msra.mxu0 %v725
        %936 = vmatprep.subr.bf16.mxu0 %v729
        %937 = vmatpush1.bf16.msra.mxu0 %v728
        %938 = vmatprep.subr.bf16.mxu0 %v732
        %939 = vmatpush1.bf16.msra.mxu0 %v731
        %940 = vmatprep.subr.bf16.mxu0 %v735
        %941 = vmatpush1.bf16.msra.mxu0 %v734
        %942 = vmatprep.subr.bf16.mxu0 %v738
        %943 = vmatpush1.bf16.msra.mxu0 %v737
        %944 = vmatprep.subr.bf16.mxu0 %v741
        %945 = vmatpush1.bf16.msra.mxu0 %v740
        %946 = vmatprep.subr.bf16.mxu0 %v744
        %947 = vmatpush1.bf16.msra.mxu0 %v743
        %948 = vmatprep.subr.bf16.mxu0 %v747
        %949 = vmatpush1.bf16.msra.mxu0 %v746
        %950 = vmatprep.subr.bf16.mxu0 0
        %951 = vmatpush1.bf16.msra.mxu0 0
        %952 = vmatprep.subr.bf16.mxu0 0
        %953 = vmatpush1.bf16.msra.mxu0 0
        %954 = vmatprep.subr.bf16.mxu0 0
        %955 = vmatpush1.bf16.msra.mxu0 0
        %956 = vmatprep.subr.bf16.mxu0 0
        %957 = vmatpush1.bf16.msra.mxu0 0
        %958 = vmatprep.subr.bf16.mxu0 0
        %959 = vmatpush1.bf16.msra.mxu0 0
        %960 = vmatprep.subr.bf16.mxu0 0
        %961 = vmatpush1.bf16.msra.mxu0 0
        %962 = vmatprep.subr.bf16.mxu0 0
        %963 = vmatpush1.bf16.msra.mxu0 0
        %964 = vmatprep.subr.bf16.mxu0 0
        %965 = vmatpush1.bf16.msra.mxu0 0
        %966 = vmatprep.mubr.bf16.mxu0 0
        %967 = vmatmul.mubr.bf16.gmra.mrb[0].mxu0 %v319
        %v968 = vpop.f32.mrb[0].mxu0
        %v969 = vadd.f32 %v856, %v968
        %v970 = vpop.f32.mrb[0].mxu0
        %v971 = vadd.f32 %v858, %v970
        %v972 = vpop.f32.mrb[0].mxu0
        %v973 = vadd.f32 %v860, %v972
        %v974 = vpop.f32.mrb[0].mxu0
        %v975 = vadd.f32 %v862, %v974
        %976 = vmatprep.mubr.bf16.mxu0 0
        %977 = vmatmul.mubr.bf16.gmra.mrb[0].mxu0 %v322
        %v978 = vpop.f32.mrb[0].mxu0
        %v979 = vadd.f32 %v866, %v978
        %v980 = vpop.f32.mrb[0].mxu0
        %v981 = vadd.f32 %v868, %v980
        %v982 = vpop.f32.mrb[0].mxu0
        %v983 = vadd.f32 %v870, %v982
        %v984 = vpop.f32.mrb[0].mxu0
        %v985 = vadd.f32 %v872, %v984
        %986 = vmatprep.mubr.bf16.mxu0 0
        %987 = vmatmul.mubr.bf16.gmra.mrb[0].mxu0 %v325
        %v988 = vpop.f32.mrb[0].mxu0
        %v989 = vadd.f32 %v876, %v988
        %v990 = vpop.f32.mrb[0].mxu0
        %v991 = vadd.f32 %v878, %v990
        %v992 = vpop.f32.mrb[0].mxu0
        %v993 = vadd.f32 %v880, %v992
        %v994 = vpop.f32.mrb[0].mxu0
        %v995 = vadd.f32 %v882, %v994
        %996 = vmatprep.mubr.bf16.mxu0 0
        %997 = vmatmul.mubr.bf16.gmra.mrb[0].mxu0 %v328
        %v998 = vpop.f32.mrb[0].mxu0
        %v999 = vadd.f32 %v886, %v998
        %v1000 = vpop.f32.mrb[0].mxu0
        %v1001 = vadd.f32 %v888, %v1000
        %v1002 = vpop.f32.mrb[0].mxu0
        %v1003 = vadd.f32 %v890, %v1002
        %v1004 = vpop.f32.mrb[0].mxu0
        %v1005 = vadd.f32 %v892, %v1004
        %1006 = vmatprep.mubr.bf16.mxu0 0
        %1007 = vmatmul.mubr.bf16.gmra.mrb[0].mxu0 %v331
        %v1008 = vpop.f32.mrb[0].mxu0
        %v1009 = vadd.f32 %v896, %v1008
        %v1010 = vpop.f32.mrb[0].mxu0
        %v1011 = vadd.f32 %v898, %v1010
        %v1012 = vpop.f32.mrb[0].mxu0
        %v1013 = vadd.f32 %v900, %v1012
        %v1014 = vpop.f32.mrb[0].mxu0
        %v1015 = vadd.f32 %v902, %v1014
        %1016 = vmatprep.mubr.bf16.mxu0 0
        %1017 = vmatmul.mubr.bf16.gmra.mrb[0].mxu0 %v334
        %v1018 = vpop.f32.mrb[0].mxu0
        %v1019 = vadd.f32 %v906, %v1018
        %v1020 = vpop.f32.mrb[0].mxu0
        %v1021 = vadd.f32 %v908, %v1020
        %v1022 = vpop.f32.mrb[0].mxu0
        %v1023 = vadd.f32 %v910, %v1022
        %v1024 = vpop.f32.mrb[0].mxu0
        %v1025 = vadd.f32 %v912, %v1024
        %1026 = vmatprep.mubr.bf16.mxu0 0
        %1027 = vmatmul.mubr.bf16.gmra.mrb[0].mxu0 %v337
        %v1028 = vpop.f32.mrb[0].mxu0
        %v1029 = vadd.f32 %v916, %v1028
        %v1030 = vpop.f32.mrb[0].mxu0
        %v1031 = vadd.f32 %v918, %v1030
        %v1032 = vpop.f32.mrb[0].mxu0
        %v1033 = vadd.f32 %v920, %v1032
        %v1034 = vpop.f32.mrb[0].mxu0
        %v1035 = vadd.f32 %v922, %v1034
        %1036 = vmatprep.mubr.bf16.mxu0 0
        %1037 = vmatmul.mubr.bf16.gmra.mrb[0].mxu0 %v340
        %v1038 = vpop.f32.mrb[0].mxu0
        %v1039 = vadd.f32 %v926, %v1038
        %v1040 = vpop.f32.mrb[0].mxu0
        %v1041 = vadd.f32 %v928, %v1040
        %v1042 = vpop.f32.mrb[0].mxu0
        %v1043 = vadd.f32 %v930, %v1042
        %v1044 = vpop.f32.mrb[0].mxu0
        %v1045 = vadd.f32 %v932, %v1044
        %1046 = vdwg.mxu0
        %1047 = vmatprep.subr.bf16.mxu0 0
        %1048 = vmatpush1.bf16.msra.mxu0 %v679
        %1049 = vmatprep.subr.bf16.mxu0 0
        %1050 = vmatpush1.bf16.msra.mxu0 %v682
        %1051 = vmatprep.subr.bf16.mxu0 0
        %1052 = vmatpush1.bf16.msra.mxu0 %v685
        %1053 = vmatprep.subr.bf16.mxu0 0
        %1054 = vmatpush1.bf16.msra.mxu0 %v688
        %1055 = vmatprep.subr.bf16.mxu0 0
        %1056 = vmatpush1.bf16.msra.mxu0 %v691
        %1057 = vmatprep.subr.bf16.mxu0 0
        %1058 = vmatpush1.bf16.msra.mxu0 %v694
        %1059 = vmatprep.subr.bf16.mxu0 0
        %1060 = vmatpush1.bf16.msra.mxu0 %v697
        %1061 = vmatprep.subr.bf16.mxu0 0
        %1062 = vmatpush1.bf16.msra.mxu0 %v700
        %1063 = vmatprep.subr.bf16.mxu0 0
        %1064 = vmatpush1.bf16.msra.mxu0 %v703
        %1065 = vmatprep.subr.bf16.mxu0 0
        %1066 = vmatpush1.bf16.msra.mxu0 %v706
        %1067 = vmatprep.subr.bf16.mxu0 0
        %1068 = vmatpush1.bf16.msra.mxu0 %v709
        %1069 = vmatprep.subr.bf16.mxu0 0
        %1070 = vmatpush1.bf16.msra.mxu0 %v712
        %1071 = vmatprep.subr.bf16.mxu0 0
        %1072 = vmatpush1.bf16.msra.mxu0 %v715
        %1073 = vmatprep.subr.bf16.mxu0 0
        %1074 = vmatpush1.bf16.msra.mxu0 %v718
        %1075 = vmatprep.subr.bf16.mxu0 0
        %1076 = vmatpush1.bf16.msra.mxu0 %v721
        %1077 = vmatprep.subr.bf16.mxu0 0
        %1078 = vmatpush1.bf16.msra.mxu0 %v724
        %1079 = vmatprep.mubr.bf16.mxu0 %v318
        %1080 = vmatmul.mubr.bf16.gmra.mrb[0].mxu0 %v317
        %v1081 = vpop.f32.mrb[0].mxu0
        %v1082 = vadd.f32 0.0, %v1081
        %v1083 = vpop.f32.mrb[0].mxu0
        %v1084 = vpop.f32.mrb[0].mxu0
        %v1085 = vadd.f32 0.0, %v1084
        %v1086 = vpop.f32.mrb[0].mxu0
        %1087 = vmatprep.mubr.bf16.mxu0 %v321
        %1088 = vmatmul.mubr.bf16.gmra.mrb[0].mxu0 %v320
        %v1089 = vpop.f32.mrb[0].mxu0
        %v1090 = vadd.f32 0.0, %v1089
        %v1091 = vpop.f32.mrb[0].mxu0
        %v1092 = vpop.f32.mrb[0].mxu0
        %v1093 = vadd.f32 0.0, %v1092
        %v1094 = vpop.f32.mrb[0].mxu0
        %1095 = vmatprep.mubr.bf16.mxu0 %v324
        %1096 = vmatmul.mubr.bf16.gmra.mrb[0].mxu0 %v323
        %v1097 = vpop.f32.mrb[0].mxu0
        %v1098 = vadd.f32 0.0, %v1097
        %v1099 = vpop.f32.mrb[0].mxu0
        %v1100 = vpop.f32.mrb[0].mxu0
        %v1101 = vadd.f32 0.0, %v1100
        %v1102 = vpop.f32.mrb[0].mxu0
        %1103 = vmatprep.mubr.bf16.mxu0 %v327
        %1104 = vmatmul.mubr.bf16.gmra.mrb[0].mxu0 %v326
        %v1105 = vpop.f32.mrb[0].mxu0
        %v1106 = vadd.f32 0.0, %v1105
        %v1107 = vpop.f32.mrb[0].mxu0
        %v1108 = vpop.f32.mrb[0].mxu0
        %v1109 = vadd.f32 0.0, %v1108
        %v1110 = vpop.f32.mrb[0].mxu0
        %1111 = vmatprep.mubr.bf16.mxu0 %v330
        %1112 = vmatmul.mubr.bf16.gmra.mrb[0].mxu0 %v329
        %v1113 = vpop.f32.mrb[0].mxu0
        %v1114 = vadd.f32 0.0, %v1113
        %v1115 = vpop.f32.mrb[0].mxu0
        %v1116 = vpop.f32.mrb[0].mxu0
        %v1117 = vadd.f32 0.0, %v1116
        %v1118 = vpop.f32.mrb[0].mxu0
        %1119 = vmatprep.mubr.bf16.mxu0 %v333
        %1120 = vmatmul.mubr.bf16.gmra.mrb[0].mxu0 %v332
        %v1121 = vpop.f32.mrb[0].mxu0
        %v1122 = vadd.f32 0.0, %v1121
        %v1123 = vpop.f32.mrb[0].mxu0
        %v1124 = vpop.f32.mrb[0].mxu0
        %v1125 = vadd.f32 0.0, %v1124
        %v1126 = vpop.f32.mrb[0].mxu0
        %1127 = vmatprep.mubr.bf16.mxu0 %v336
        %1128 = vmatmul.mubr.bf16.gmra.mrb[0].mxu0 %v335
        %v1129 = vpop.f32.mrb[0].mxu0
        %v1130 = vadd.f32 0.0, %v1129
        %v1131 = vpop.f32.mrb[0].mxu0
        %v1132 = vpop.f32.mrb[0].mxu0
        %v1133 = vadd.f32 0.0, %v1132
        %v1134 = vpop.f32.mrb[0].mxu0
        %1135 = vmatprep.mubr.bf16.mxu0 %v339
        %1136 = vmatmul.mubr.bf16.gmra.mrb[0].mxu0 %v338
        %v1137 = vpop.f32.mrb[0].mxu0
        %v1138 = vadd.f32 0.0, %v1137
        %v1139 = vpop.f32.mrb[0].mxu0
        %v1140 = vpop.f32.mrb[0].mxu0
        %v1141 = vadd.f32 0.0, %v1140
        %v1142 = vpop.f32.mrb[0].mxu0
        %1143 = vdwg.mxu0
        %1144 = vmatprep.subr.bf16.mxu0 0
        %1145 = vmatpush1.bf16.msra.mxu0 %v727
        %1146 = vmatprep.subr.bf16.mxu0 0
        %1147 = vmatpush1.bf16.msra.mxu0 %v730
        %1148 = vmatprep.subr.bf16.mxu0 0
        %1149 = vmatpush1.bf16.msra.mxu0 %v733
        %1150 = vmatprep.subr.bf16.mxu0 0
        %1151 = vmatpush1.bf16.msra.mxu0 %v736
        %1152 = vmatprep.subr.bf16.mxu0 0
        %1153 = vmatpush1.bf16.msra.mxu0 %v739
        %1154 = vmatprep.subr.bf16.mxu0 0
        %1155 = vmatpush1.bf16.msra.mxu0 %v742
        %1156 = vmatprep.subr.bf16.mxu0 0
        %1157 = vmatpush1.bf16.msra.mxu0 %v745
        %1158 = vmatprep.subr.bf16.mxu0 0
        %1159 = vmatpush1.bf16.msra.mxu0 %v748
        %1160 = vmatprep.subr.bf16.mxu0 0
        %1161 = vmatpush1.bf16.msra.mxu0 0
        %1162 = vmatprep.subr.bf16.mxu0 0
        %1163 = vmatpush1.bf16.msra.mxu0 0
        %1164 = vmatprep.subr.bf16.mxu0 0
        %1165 = vmatpush1.bf16.msra.mxu0 0
        %1166 = vmatprep.subr.bf16.mxu0 0
        %1167 = vmatpush1.bf16.msra.mxu0 0
        %1168 = vmatprep.subr.bf16.mxu0 0
        %1169 = vmatpush1.bf16.msra.mxu0 0
        %1170 = vmatprep.subr.bf16.mxu0 0
        %1171 = vmatpush1.bf16.msra.mxu0 0
        %1172 = vmatprep.subr.bf16.mxu0 0
        %1173 = vmatpush1.bf16.msra.mxu0 0
        %1174 = vmatprep.subr.bf16.mxu0 0
        %1175 = vmatpush1.bf16.msra.mxu0 0
        %1176 = vmatprep.mubr.bf16.mxu0 0
        %1177 = vmatmul.mubr.bf16.gmra.mrb[0].mxu0 %v319
        %v1178 = vpop.f32.mrb[0].mxu0
        %v1179 = vadd.f32 %v1082, %v1178
        %v1180 = vpop.f32.mrb[0].mxu0
        %v1181 = vpop.f32.mrb[0].mxu0
        %v1182 = vadd.f32 %v1085, %v1181
        %v1183 = vpop.f32.mrb[0].mxu0
        %1184 = vmatprep.mubr.bf16.mxu0 0
        %1185 = vmatmul.mubr.bf16.gmra.mrb[0].mxu0 %v322
        %v1186 = vpop.f32.mrb[0].mxu0
        %v1187 = vadd.f32 %v1090, %v1186
        %v1188 = vpop.f32.mrb[0].mxu0
        %v1189 = vpop.f32.mrb[0].mxu0
        %v1190 = vadd.f32 %v1093, %v1189
        %v1191 = vpop.f32.mrb[0].mxu0
        %1192 = vmatprep.mubr.bf16.mxu0 0
        %1193 = vmatmul.mubr.bf16.gmra.mrb[0].mxu0 %v325
        %v1194 = vpop.f32.mrb[0].mxu0
        %v1195 = vadd.f32 %v1098, %v1194
        %v1196 = vpop.f32.mrb[0].mxu0
        %v1197 = vpop.f32.mrb[0].mxu0
        %v1198 = vadd.f32 %v1101, %v1197
        %v1199 = vpop.f32.mrb[0].mxu0
        %1200 = vmatprep.mubr.bf16.mxu0 0
        %1201 = vmatmul.mubr.bf16.gmra.mrb[0].mxu0 %v328
        %v1202 = vpop.f32.mrb[0].mxu0
        %v1203 = vadd.f32 %v1106, %v1202
        %v1204 = vpop.f32.mrb[0].mxu0
        %v1205 = vpop.f32.mrb[0].mxu0
        %v1206 = vadd.f32 %v1109, %v1205
        %v1207 = vpop.f32.mrb[0].mxu0
        %1208 = vmatprep.mubr.bf16.mxu0 0
        %1209 = vmatmul.mubr.bf16.gmra.mrb[0].mxu0 %v331
        %v1210 = vpop.f32.mrb[0].mxu0
        %v1211 = vadd.f32 %v1114, %v1210
        %v1212 = vpop.f32.mrb[0].mxu0
        %v1213 = vpop.f32.mrb[0].mxu0
        %v1214 = vadd.f32 %v1117, %v1213
        %v1215 = vpop.f32.mrb[0].mxu0
        %1216 = vmatprep.mubr.bf16.mxu0 0
        %1217 = vmatmul.mubr.bf16.gmra.mrb[0].mxu0 %v334
        %v1218 = vpop.f32.mrb[0].mxu0
        %v1219 = vadd.f32 %v1122, %v1218
        %v1220 = vpop.f32.mrb[0].mxu0
        %v1221 = vpop.f32.mrb[0].mxu0
        %v1222 = vadd.f32 %v1125, %v1221
        %v1223 = vpop.f32.mrb[0].mxu0
        %1224 = vmatprep.mubr.bf16.mxu0 0
        %1225 = vmatmul.mubr.bf16.gmra.mrb[0].mxu0 %v337
        %v1226 = vpop.f32.mrb[0].mxu0
        %v1227 = vadd.f32 %v1130, %v1226
        %v1228 = vpop.f32.mrb[0].mxu0
        %v1229 = vpop.f32.mrb[0].mxu0
        %v1230 = vadd.f32 %v1133, %v1229
        %v1231 = vpop.f32.mrb[0].mxu0
        %1232 = vmatprep.mubr.bf16.mxu0 0
        %1233 = vmatmul.mubr.bf16.gmra.mrb[0].mxu0 %v340
        %v1234 = vpop.f32.mrb[0].mxu0
        %v1235 = vadd.f32 %v1138, %v1234
        %v1236 = vpop.f32.mrb[0].mxu0
        %v1237 = vpop.f32.mrb[0].mxu0
        %v1238 = vadd.f32 %v1141, %v1237
        %v1239 = vpop.f32.mrb[0].mxu0
        %1240 = vdwg.mxu0
        %v1241 = vmul.f32 %v969, 0.05103104
        %v1242 = vmul.f32 %v971, 0.05103104
        %v1243 = vmul.f32 %v1179, 0.05103104
        %v1244 = vmul.f32 %v973, 0.05103104
        %v1245 = vmul.f32 %v975, 0.05103104
        %v1246 = vmul.f32 %v1182, 0.05103104
        %v1247 = vmul.f32 %v979, 0.05103104
        %v1248 = vmul.f32 %v981, 0.05103104
        %v1249 = vmul.f32 %v1187, 0.05103104
        %v1250 = vmul.f32 %v983, 0.05103104
        %v1251 = vmul.f32 %v985, 0.05103104
        %v1252 = vmul.f32 %v1190, 0.05103104
        %v1253 = vmul.f32 %v989, 0.05103104
        %v1254 = vmul.f32 %v991, 0.05103104
        %v1255 = vmul.f32 %v1195, 0.05103104
        %v1256 = vmul.f32 %v993, 0.05103104
        %v1257 = vmul.f32 %v995, 0.05103104
        %v1258 = vmul.f32 %v1198, 0.05103104
        %v1259 = vmul.f32 %v999, 0.05103104
        %v1260 = vmul.f32 %v1001, 0.05103104
        %v1261 = vmul.f32 %v1203, 0.05103104
        %v1262 = vmul.f32 %v1003, 0.05103104
        %v1263 = vmul.f32 %v1005, 0.05103104
        %v1264 = vmul.f32 %v1206, 0.05103104
        %v1265 = vmul.f32 %v1009, 0.05103104
        %v1266 = vmul.f32 %v1011, 0.05103104
        %v1267 = vmul.f32 %v1211, 0.05103104
        %v1268 = vmul.f32 %v1013, 0.05103104
        %v1269 = vmul.f32 %v1015, 0.05103104
        %v1270 = vmul.f32 %v1214, 0.05103104
        %v1271 = vmul.f32 %v1019, 0.05103104
        %v1272 = vmul.f32 %v1021, 0.05103104
        %v1273 = vmul.f32 %v1219, 0.05103104
        %v1274 = vmul.f32 %v1023, 0.05103104
        %v1275 = vmul.f32 %v1025, 0.05103104
        %v1276 = vmul.f32 %v1222, 0.05103104
        %v1277 = vmul.f32 %v1029, 0.05103104
        %v1278 = vmul.f32 %v1031, 0.05103104
        %v1279 = vmul.f32 %v1227, 0.05103104
        %v1280 = vmul.f32 %v1033, 0.05103104
        %v1281 = vmul.f32 %v1035, 0.05103104
        %v1282 = vmul.f32 %v1230, 0.05103104
        %v1283 = vmul.f32 %v1039, 0.05103104
        %v1284 = vmul.f32 %v1041, 0.05103104
        %v1285 = vmul.f32 %v1235, 0.05103104
        %v1286 = vmul.f32 %v1043, 0.05103104
        %v1287 = vmul.f32 %v1045, 0.05103104
        %v1288 = vmul.f32 %v1238, 0.05103104
        %v1289 = vld [vmem:[%s264] sm:$0x7]
        %v1291 = vlaneseq
        %v1292 = vshrl.u32 %v1291, 7
        %v1293 = vsub.s32 0, %v1292
        %v1294 = vrot.slane %v1289, %v1293
        %v1295 = vlaneseq
        %v1296 = vshrl.u32 %v1295, 7
        %v1297 = vsub.s32 1, %v1296
        %v1298 = vrot.slane %v1289, %v1297
        %v1299 = vlaneseq
        %v1300 = vshrl.u32 %v1299, 7
        %v1301 = vsub.s32 2, %v1300
        %v1302 = vrot.slane %v1289, %v1301
        %v1306 = vadd.f32 %v1241, %v1294
        %v1307 = vadd.f32 %v1242, %v1298
        %v1308 = vadd.f32 %v1243, %v1302
        %v1309 = vadd.f32 %v1244, %v1294
        %v1310 = vadd.f32 %v1245, %v1298
        %v1311 = vadd.f32 %v1246, %v1302
        %v1312 = vadd.f32 %v1247, %v1294
        %v1313 = vadd.f32 %v1248, %v1298
        %v1314 = vadd.f32 %v1249, %v1302
        %v1315 = vadd.f32 %v1250, %v1294
        %v1316 = vadd.f32 %v1251, %v1298
        %v1317 = vadd.f32 %v1252, %v1302
        %v1318 = vadd.f32 %v1253, %v1294
        %v1319 = vadd.f32 %v1254, %v1298
        %v1320 = vadd.f32 %v1255, %v1302
        %v1321 = vadd.f32 %v1256, %v1294
        %v1322 = vadd.f32 %v1257, %v1298
        %v1323 = vadd.f32 %v1258, %v1302
        %v1324 = vadd.f32 %v1259, %v1294
        %v1325 = vadd.f32 %v1260, %v1298
        %v1326 = vadd.f32 %v1261, %v1302
        %v1327 = vadd.f32 %v1262, %v1294
        %v1328 = vadd.f32 %v1263, %v1298
        %v1329 = vadd.f32 %v1264, %v1302
        %v1330 = vadd.f32 %v1265, %v1294
        %v1331 = vadd.f32 %v1266, %v1298
        %v1332 = vadd.f32 %v1267, %v1302
        %v1333 = vadd.f32 %v1268, %v1294
        %v1334 = vadd.f32 %v1269, %v1298
        %v1335 = vadd.f32 %v1270, %v1302
        %v1336 = vadd.f32 %v1271, %v1294
        %v1337 = vadd.f32 %v1272, %v1298
        %v1338 = vadd.f32 %v1273, %v1302
        %v1339 = vadd.f32 %v1274, %v1294
        %v1340 = vadd.f32 %v1275, %v1298
        %v1341 = vadd.f32 %v1276, %v1302
        %v1342 = vadd.f32 %v1277, %v1294
        %v1343 = vadd.f32 %v1278, %v1298
        %v1344 = vadd.f32 %v1279, %v1302
        %v1345 = vadd.f32 %v1280, %v1294
        %v1346 = vadd.f32 %v1281, %v1298
        %v1347 = vadd.f32 %v1282, %v1302
        %v1348 = vadd.f32 %v1283, %v1294
        %v1349 = vadd.f32 %v1284, %v1298
        %v1350 = vadd.f32 %v1285, %v1302
        %v1351 = vadd.f32 %v1286, %v1294
        %v1352 = vadd.f32 %v1287, %v1298
        %v1353 = vadd.f32 %v1288, %v1302
        %1354 = vst [vmem:[%s256] sm:$0xff] %v1306
        %1355 = vst [vmem:[%s256 + $0x8] sm:$0xff] %v1307
        %1356 = vst [vmem:[%s256 + $0x10] sm:$0xff] %v1308
        %1357 = vst [vmem:[%s256 + $0x18] sm:$0xff] %v1309
        %1358 = vst [vmem:[%s256 + $0x20] sm:$0xff] %v1310
        %1359 = vst [vmem:[%s256 + $0x28] sm:$0xff] %v1311
        %1360 = vst [vmem:[%s256 + $0x30] sm:$0xff] %v1312
        %1361 = vst [vmem:[%s256 + $0x38] sm:$0xff] %v1313
        %1362 = vst [vmem:[%s256 + $0x40] sm:$0xff] %v1314
        %1363 = vst [vmem:[%s256 + $0x48] sm:$0xff] %v1315
        %1364 = vst [vmem:[%s256 + $0x50] sm:$0xff] %v1316
        %1365 = vst [vmem:[%s256 + $0x58] sm:$0xff] %v1317
        %1366 = vst [vmem:[%s256 + $0x60] sm:$0xff] %v1318
        %1367 = vst [vmem:[%s256 + $0x68] sm:$0xff] %v1319
        %1368 = vst [vmem:[%s256 + $0x70] sm:$0xff] %v1320
        %1369 = vst [vmem:[%s256 + $0x78] sm:$0xff] %v1321
        %1370 = vst [vmem:[%s256 + $0x80] sm:$0xff] %v1322
        %1371 = vst [vmem:[%s256 + $0x88] sm:$0xff] %v1323
        %1372 = vst [vmem:[%s256 + $0x90] sm:$0xff] %v1324
        %1373 = vst [vmem:[%s256 + $0x98] sm:$0xff] %v1325
        %1374 = vst [vmem:[%s256 + $0xa0] sm:$0xff] %v1326
        %1375 = vst [vmem:[%s256 + $0xa8] sm:$0xff] %v1327
        %1376 = vst [vmem:[%s256 + $0xb0] sm:$0xff] %v1328
        %1377 = vst [vmem:[%s256 + $0xb8] sm:$0xff] %v1329
        %1378 = vst [vmem:[%s256 + $0xc0] sm:$0xff] %v1330
        %1379 = vst [vmem:[%s256 + $0xc8] sm:$0xff] %v1331
        %1380 = vst [vmem:[%s256 + $0xd0] sm:$0xff] %v1332
        %1381 = vst [vmem:[%s256 + $0xd8] sm:$0xff] %v1333
        %1382 = vst [vmem:[%s256 + $0xe0] sm:$0xff] %v1334
        %1383 = vst [vmem:[%s256 + $0xe8] sm:$0xff] %v1335
        %1384 = vst [vmem:[%s256 + $0xf0] sm:$0xff] %v1336
        %1385 = vst [vmem:[%s256 + $0xf8] sm:$0xff] %v1337
        %1386 = vst [vmem:[%s256 + $0x100] sm:$0xff] %v1338
        %1387 = vst [vmem:[%s256 + $0x108] sm:$0xff] %v1339
        %1388 = vst [vmem:[%s256 + $0x110] sm:$0xff] %v1340
        %1389 = vst [vmem:[%s256 + $0x118] sm:$0xff] %v1341
        %1390 = vst [vmem:[%s256 + $0x120] sm:$0xff] %v1342
        %1391 = vst [vmem:[%s256 + $0x128] sm:$0xff] %v1343
        %1392 = vst [vmem:[%s256 + $0x130] sm:$0xff] %v1344
        %1393 = vst [vmem:[%s256 + $0x138] sm:$0xff] %v1345
        %1394 = vst [vmem:[%s256 + $0x140] sm:$0xff] %v1346
        %1395 = vst [vmem:[%s256 + $0x148] sm:$0xff] %v1347
        %1396 = vst [vmem:[%s256 + $0x150] sm:$0xff] %v1348
        %1397 = vst [vmem:[%s256 + $0x158] sm:$0xff] %v1349
        %1398 = vst [vmem:[%s256 + $0x160] sm:$0xff] %v1350
        %1399 = vst [vmem:[%s256 + $0x168] sm:$0xff] %v1351
        %1400 = vst [vmem:[%s256 + $0x170] sm:$0xff] %v1352
        %1401 = vst [vmem:[%s256 + $0x178] sm:$0xff] %v1353
        %s1402 = sand.u32 %s132, 1
        %s1403 = scalar_lea.sflag [#allocation4], %s1402
        %s1404 = sand.u32 %s132, 1
        %s1405 = smul.addr %s1404, 384
        %s1406 = scalar_lea.vmem [#allocation7], %s1405
        // Predicated region
        $region41: #{tpu_custom_call.1} parent=31 // pred_check
          %p1407 = pneg %p142
        $region42: #{tpu_custom_call.1} parent=31 // pred_check_branch
          %1409 = sbr.rel (%p1407) target = $region44
        $region43: #{tpu_custom_call.1} parent=31 // pred_region
          %s1410 = smul.u32 16, %s26
          %s1411 = smul.u32 3, %s27
          %s1413 = ssub.s32 6144, 6144
          %1414 = vsyncadd %s1403, %s1413
          %s1415 = smul.addr %s1410, 3
          %s1416 = sadd.s32 %s1411, %s1415
          %s1417 = smul.addr %s1416, 128
          %s1418 = scalar_lea.hbm %s3, %s1417
          %s1419 = sshll.u32 %s1406, 4
          %s1420 = int_to_ptr.vmem [resolvable:$true] %s1419
          %1425 = dma.vmem_to_hbm [thread:$0]  %s1420, 6144, %s1418, %s1403, 384, 384, 24
        $region44: #{tpu_custom_call.1} parent=31 // pred_fallthru
          _
      $region32: #{tpu_custom_call.1} parent=5 // pred_fallthru
        _
      %p1426 = scmp.le.s32.totalorder 2, %s16
      // Predicated region
      $region45: #{tpu_custom_call.1} parent=5 // pred_check
        %p1427 = pneg %p1426
      $region46: #{tpu_custom_call.1} parent=5 // pred_check_branch
        %1429 = sbr.rel (%p1427) target = $region48
      $region47: #{tpu_custom_call.1} parent=5 // pred_region
        %s1430 = ssub.s32 %s16, 2
        // Predicated region
        $region49: #{tpu_custom_call.1} parent=47 // pred_check
          %p1431 = pneg %p148
        $region50: #{tpu_custom_call.1} parent=47 // pred_check_branch
          %1433 = sbr.rel (%p1431) target = $region52
        $region51: #{tpu_custom_call.1} parent=47 // pred_region
          %s1434 = sand.u32 %s133, 1
          %s1435 = scalar_lea.sflag [#allocation4], %s1434
          %s1436 = sand.u32 %s133, 1
          %s1437 = smul.addr %s1436, 384
          %s1438 = scalar_lea.vmem [#allocation7], %s1437
          %1439 = dma.done %s1435, 6144
        $region52: #{tpu_custom_call.1} parent=47 // pred_fallthru
          _
      $region48: #{tpu_custom_call.1} parent=5 // pred_fallthru
        _
    $region6: #{tpu_custom_call.1} parent=1 // loop_footer
      %s20 = sadd.s32 1, %s16
    $region7: #{tpu_custom_call.1} parent=1 // loop_footer_branch
      %15 = sbr.rel target = $region3
    $region8: #{tpu_custom_call.1} parent=1 // loop_exit
      _
    %1440 = vsyncpa [#allocation3], 1
    %s1441 = scalar_lea.sflag [#allocation3], 1
    %1442 = vsyncpa %s1441, 1
    %1443 = vsyncpa [#allocation6], 1
    %1444 = vsyncpa [#allocation4], 1
    %s1445 = scalar_lea.sflag [#allocation4], 1
    %1446 = vsyncpa %s1445, 1

</llo_original>
